<compile_context>
chip_gen: v5e
topology: v5e:2x2
jax: 0.10.0
libtpu: 0.0.40
codegen_flags: <defaults>
</compile_context>

<pallas_src>
import math
import functools

import jax
import jax.numpy as jnp
from jax.experimental import pallas as pl
from jax.experimental.pallas import tpu as pltpu


def _semi_attn_kernel(xs_ref, xp_ref, qw_ref, kw_ref, vw_ref, vb_ref,
                      la_ref, lb_ref, cw_ref, cb_ref, o_ref, y_scr, *,
                      n_head, head_dim, lora_scaling, tb, n_tok, mxu_dtype):
    """One grid step: TB token-groups, i.e. a (R, D) = (TB*N, D) slab."""
    D = n_head * head_dim
    R = tb * n_tok

    def mm(a, b):
        return jnp.dot(a.astype(mxu_dtype), b.astype(mxu_dtype),
                       preferred_element_type=jnp.float32)

    xs = xs_ref[...]   # (R, D) shared stream  -> q, k  (already mxu_dtype)
    xp = xp_ref[...]   # (R, D) private stream -> v

    # --- projections: K = D matmuls over all R rows -------------------------
    # 1/sqrt(head_dim) is pre-folded into q_w on the host.
    q = mm(xs, qw_ref[...]).astype(mxu_dtype)                   # cast once
    k = mm(xs, kw_ref[...]).astype(mxu_dtype)                   # cast once
    v = mm(xp, vw_ref[...]) + vb_ref[...]                       # (R, D) f32
    # LoRA adapter on v: v + (v @ A @ B) * scaling  (add kept in f32)
    v = v + mm(mm(v, la_ref[...]), lb_ref[...]) * lora_scaling
    v = v.astype(mxu_dtype)                                     # cast once

    q3 = q.reshape(tb, n_tok, D)   # leading-dim reshape only (free)
    k3 = k.reshape(tb, n_tok, D)
    v3 = v.reshape(tb, n_tok, D)

    # --- multi-head attention over the token axis (length N) ----------------
    # Static head loop of single-batch-dim einsums; per-head outputs land in
    # the (R, D) scratch so the output projection below is a single K=D
    # matmul.  (For head_dim <= 16 and tiny N a VPU formulation would also
    # work, but the MXU is idle-enough here that it is not worth the branch.)
    for h in range(n_head):
        sl = slice(h * head_dim, (h + 1) * head_dim)
        s = jnp.einsum('bnd,bmd->bnm', q3[:, :, sl], k3[:, :, sl],
                       preferred_element_type=jnp.float32)      # (TB, N, N)
        m = jnp.max(s, axis=-1, keepdims=True)
        e = jnp.exp(s - m)
        p = e * pl.reciprocal(jnp.sum(e, axis=-1, keepdims=True), approx=True)
        yh = jnp.einsum('bnm,bmd->bnd', p.astype(mxu_dtype), v3[:, :, sl],
                        preferred_element_type=jnp.float32)     # (TB, N, hd)
        y_scr[:, sl] = yh.reshape(R, head_dim).astype(y_scr.dtype)

    # --- single output projection: (R, D) x (D, D) + bias --------------------
    out = mm(y_scr[...], cw_ref[...]) + cb_ref[...]
    o_ref[...] = out.astype(o_ref.dtype)


def _pick_row_block(bt, n, *, sublane, max_rows):
    """Token-groups per grid step.

    Targets >= 4 grid steps (>= 2 per TensorCore on dual-TC v7x so the
    activation DMAs pipeline against compute) and a ~512-row slab for the MXU,
    subject to the VMEM row budget, divisibility of BT, and the sublane tile
    (16 rows for bf16 blocks, 8 for f32)."""
    min_steps = min(4, bt)
    cap = max(1, min(bt,
                     bt // min_steps,            # leave >= min_steps steps
                     max(1, 512 // max(n, 1)),   # ~512-row slab target
                     max(1, max_rows // max(n, 1))))
    for d in range(cap, 0, -1):
        if bt % d == 0 and (d * n) % sublane == 0:
            return d
    for d in range(cap, 0, -1):                  # relaxed: f32 sublane tile
        if bt % d == 0 and (d * n) % 8 == 0:
            return d
    return bt  # full-extent block is always legal (exempt from (8,128) rule)


def semi_self_attention(h_private, h_shared, params, n_head, *,
                        mxu_dtype=jnp.float32, out_dtype=jnp.float32,
                        vmem_budget_bytes=40 * 2**20):
    B, T, N, D = h_private.shape
    assert h_shared.shape == h_private.shape
    assert D % n_head == 0
    BT = B * T
    head_dim = D // n_head
    rank = params["lora_A"].shape[1]
    lora_scaling = 1.0 / rank            # alpha = 1.0 in the PyTorch module

    act_b = jnp.dtype(mxu_dtype).itemsize
    out_b = jnp.dtype(out_dtype).itemsize
    w_b = act_b
    sublane = 16 if act_b == 2 else 8

    # ---- VMEM budgeting (explicit, so the tiling also fits v7x's 64 MiB) ----
    weight_bytes = (4 * D * D + 2 * D * rank) * w_b + 2 * D * 4  # single-buffered
    per_row = (D * (4 * act_b            # xs, xp blocks, double-buffered
                    + 2 * out_b          # output block, double-buffered
                    + act_b              # y scratch
                    + 24)                # q/k/v/f32 intermediates headroom
               + 3 * n_head * N * 4)     # per-head scores/softmax temps
    avail = max(vmem_budget_bytes - weight_bytes, 0)
    max_rows = max(N, avail // per_row)

    TB = _pick_row_block(BT, N, sublane=sublane, max_rows=max_rows)
    R = TB * N
    grid = (BT // TB,)

    est_bytes = weight_bytes + R * per_row
    vmem_limit = int(min(max(2 * est_bytes, 32 * 2**20), 48 * 2**20))

    # Split the fused qk weight into lane-dense q_w / k_w and fold the
    # attention scale into q_w (host-side, zero kernel cost).
    scale = 1.0 / math.sqrt(head_dim)
    q_w = params["qk_w"][:, :D] * scale
    k_w = params["qk_w"][:, D:]

    # Cast activations/weights in the wrapper (also shrinks HBM traffic for
    # bf16). Biases / element-wise path stay f32 (v5e has no bf16 VPU).
    xs = h_shared.reshape(BT * N, D).astype(mxu_dtype)
    xp = h_private.reshape(BT * N, D).astype(mxu_dtype)
    wcast = lambda w: w.astype(mxu_dtype)

    kernel = functools.partial(
        _semi_attn_kernel, n_head=n_head, head_dim=head_dim,
        lora_scaling=lora_scaling, tb=TB, n_tok=N, mxu_dtype=mxu_dtype)

    resident = pl.Buffered(1)  # constant-index weights: no double buffering

    def full(shape):
        return pl.BlockSpec(shape, lambda i: (0,) * len(shape),
                            pipeline_mode=resident)

    row_spec = pl.BlockSpec((R, D), lambda i: (i, 0))

    out = pl.pallas_call(
        kernel,
        out_shape=jax.ShapeDtypeStruct((BT * N, D), out_dtype),
        grid=grid,
        in_specs=[
            row_spec,            # shared rows  -> q, k
            row_spec,            # private rows -> v
            full((D, D)),        # q_w (scale folded in)
            full((D, D)),        # k_w
            full((D, D)),        # v_w
            full((1, D)),        # v_b (f32)
            full((D, rank)),     # lora_A
            full((rank, D)),     # lora_B
            full((D, D)),        # c_w
            full((1, D)),        # c_b (f32)
        ],
        out_specs=row_spec,
        scratch_shapes=[pltpu.VMEM((R, D), mxu_dtype)],   # per-head y assembly
        compiler_params=pltpu.CompilerParams(
            dimension_semantics=("parallel",),
            vmem_limit_bytes=vmem_limit),
    )(xs, xp, wcast(q_w), wcast(k_w), wcast(params["v_w"]),
      params["v_b"].astype(jnp.float32),
      wcast(params["lora_A"]), wcast(params["lora_B"]),
      wcast(params["c_w"]), params["c_b"].astype(jnp.float32))

    return out.reshape(B, T, N, D)


def reference(h_private, h_shared, params, n_head):
    """Pure-JAX reference mirroring the PyTorch forward (eval mode)."""
    B, T, N, D = h_private.shape
    hd = D // n_head
    xp = h_private.reshape(B * T, N, D)
    xs = h_shared.reshape(B * T, N, D)
    qk = xs @ params["qk_w"]
    q, k = qk[..., :D], qk[..., D:]
    v = xp @ params["v_w"] + params["v_b"]
    rank = params["lora_A"].shape[1]
    v = v + (v @ params["lora_A"] @ params["lora_B"]) * (1.0 / rank)

    def split(x):
        return x.reshape(B * T, N, n_head, hd).transpose(0, 2, 1, 3)

    qh, kh, vh = split(q), split(k), split(v)
    s = jnp.einsum("bhnd,bhmd->bhnm", qh, kh) / math.sqrt(hd)
    p = jax.nn.softmax(s, axis=-1)
    y = jnp.einsum("bhnm,bhmd->bhnd", p, vh)
    y = y.transpose(0, 2, 1, 3).reshape(B * T, N, D)
    y = y @ params["c_w"] + params["c_b"]
    return y.reshape(B, T, N, D)


if __name__ == "__main__":
    # Small shapes consistent with the module: (B, T, N, D), attn_dim=-2 -> L=N
    B, T, N, D = 2, 4, 8, 32
    n_head = 4
    rank = min(16, D // 4)  # = 8

    key = jax.random.PRNGKey(0)
    ks = jax.random.split(key, 10)

    params = {
        # Linear weights stored as (in, out) == PyTorch weight.T
        "qk_w": jax.random.normal(ks[0], (D, 2 * D), jnp.float32) * 0.05,
        "v_w": jax.random.normal(ks[1], (D, D), jnp.float32) * 0.05,
        "v_b": jax.random.normal(ks[2], (1, D), jnp.float32) * 0.05,
        "lora_A": jax.random.normal(ks[3], (D, rank), jnp.float32) * 0.01,
        # PyTorch init zeros lora_B; use small nonzero values to exercise path
        "lora_B": jax.random.normal(ks[4], (rank, D), jnp.float32) * 0.01,
        "c_w": jax.random.normal(ks[5], (D, D), jnp.float32) * 0.05,
        "c_b": jax.random.normal(ks[6], (1, D), jnp.float32) * 0.05,
    }

    h_private = jax.random.normal(ks[7], (B, T, N, D), jnp.float32)
    h_shared = jax.random.normal(ks[8], (B, T, N, D), jnp.float32)

    y_ref = reference(h_private, h_shared, params, n_head)

    # f32 MXU path (tight check; tolerance absorbs the approx reciprocal).
    y_f32 = semi_self_attention(h_private, h_shared, params, n_head,
                                mxu_dtype=jnp.float32, out_dtype=jnp.float32)
    jax.block_until_ready(y_f32)
    assert y_f32.shape == (B, T, N, D)
    assert jnp.allclose(y_f32, y_ref, atol=2e-3, rtol=2e-3), "f32 mismatch"

    # bf16 MXU inputs + bf16 output (v5e/v6e/v7x fast path, f32 accumulation).
    y_bf16 = semi_self_attention(h_private, h_shared, params, n_head,
                                 mxu_dtype=jnp.bfloat16,
                                 out_dtype=jnp.bfloat16)
    jax.block_until_ready(y_bf16)
    assert jnp.allclose(y_bf16.astype(jnp.float32), y_ref,
                        atol=3e-2, rtol=3e-2), "bf16 mismatch"

    print("KERNEL_OK")
</pallas_src>

<mosaic_0001>
module attributes {stable_mosaic.version = 11 : i64} {
  func.func @_semi_attn_kernel(%arg0: i32, %arg1: memref<16x32xf32, #tpu.memory_space<vmem>>, %arg2: memref<16x32xf32, #tpu.memory_space<vmem>>, %arg3: memref<32x32xf32, #tpu.memory_space<vmem>>, %arg4: memref<32x32xf32, #tpu.memory_space<vmem>>, %arg5: memref<32x32xf32, #tpu.memory_space<vmem>>, %arg6: memref<1x32xf32, #tpu.memory_space<vmem>>, %arg7: memref<32x8xf32, #tpu.memory_space<vmem>>, %arg8: memref<8x32xf32, #tpu.memory_space<vmem>>, %arg9: memref<32x32xf32, #tpu.memory_space<vmem>>, %arg10: memref<1x32xf32, #tpu.memory_space<vmem>>, %arg11: memref<16x32xf32, #tpu.memory_space<vmem>>, %arg12: memref<16x32xf32, #tpu.memory_space<vmem>>) attributes {dimension_semantics = [#tpu.dimension_semantics<parallel>], iteration_bounds = array<i64: 4>, scalar_prefetch = 0 : i64, scratch_operands = 1 : i64, tpu.core_type = #tpu.core_type<tc>, window_params = [{transform_indices = @transform_0, window_bounds = array<i64: 16, 32>}, {transform_indices = @transform_1, window_bounds = array<i64: 16, 32>}, {pipeline_mode = #tpu.pipeline_mode<synchronous>, transform_indices = @transform_2, window_bounds = array<i64: 32, 32>}, {pipeline_mode = #tpu.pipeline_mode<synchronous>, transform_indices = @transform_3, window_bounds = array<i64: 32, 32>}, {pipeline_mode = #tpu.pipeline_mode<synchronous>, transform_indices = @transform_4, window_bounds = array<i64: 32, 32>}, {pipeline_mode = #tpu.pipeline_mode<synchronous>, transform_indices = @transform_5, window_bounds = array<i64: 1, 32>}, {pipeline_mode = #tpu.pipeline_mode<synchronous>, transform_indices = @transform_6, window_bounds = array<i64: 32, 8>}, {pipeline_mode = #tpu.pipeline_mode<synchronous>, transform_indices = @transform_7, window_bounds = array<i64: 8, 32>}, {pipeline_mode = #tpu.pipeline_mode<synchronous>, transform_indices = @transform_8, window_bounds = array<i64: 32, 32>}, {pipeline_mode = #tpu.pipeline_mode<synchronous>, transform_indices = @transform_9, window_bounds = array<i64: 1, 32>}, {transform_indices = @transform_10, window_bounds = array<i64: 16, 32>}]} {
    %c0 = arith.constant 0 : index
    %c0_0 = arith.constant 0 : index
    %0 = vector.load %arg1[%c0, %c0_0] : memref<16x32xf32, #tpu.memory_space<vmem>>, vector<16x32xf32>
    %c0_1 = arith.constant 0 : index
    %c0_2 = arith.constant 0 : index
    %1 = vector.load %arg2[%c0_1, %c0_2] : memref<16x32xf32, #tpu.memory_space<vmem>>, vector<16x32xf32>
    %c0_3 = arith.constant 0 : index
    %c0_4 = arith.constant 0 : index
    %2 = vector.load %arg3[%c0_3, %c0_4] : memref<32x32xf32, #tpu.memory_space<vmem>>, vector<32x32xf32>
    %cst = arith.constant dense<0.000000e+00> : vector<16x32xf32>
    %3 = tpu.matmul %0, %2, %cst {dimension_numbers = #tpu.dot_dimension_numbers<[1], [0], [0], [1], [0, 0, 1, 1], [], []>} : vector<16x32xf32>, vector<32x32xf32>, vector<16x32xf32> -> vector<16x32xf32>
    %c0_5 = arith.constant 0 : index
    %c0_6 = arith.constant 0 : index
    %4 = vector.load %arg4[%c0_5, %c0_6] : memref<32x32xf32, #tpu.memory_space<vmem>>, vector<32x32xf32>
    %cst_7 = arith.constant dense<0.000000e+00> : vector<16x32xf32>
    %5 = tpu.matmul %0, %4, %cst_7 {dimension_numbers = #tpu.dot_dimension_numbers<[1], [0], [0], [1], [0, 0, 1, 1], [], []>} : vector<16x32xf32>, vector<32x32xf32>, vector<16x32xf32> -> vector<16x32xf32>
    %c0_8 = arith.constant 0 : index
    %c0_9 = arith.constant 0 : index
    %6 = vector.load %arg5[%c0_8, %c0_9] : memref<32x32xf32, #tpu.memory_space<vmem>>, vector<32x32xf32>
    %cst_10 = arith.constant dense<0.000000e+00> : vector<16x32xf32>
    %7 = tpu.matmul %1, %6, %cst_10 {dimension_numbers = #tpu.dot_dimension_numbers<[1], [0], [0], [1], [0, 0, 1, 1], [], []>} : vector<16x32xf32>, vector<32x32xf32>, vector<16x32xf32> -> vector<16x32xf32>
    %c0_11 = arith.constant 0 : index
    %c0_12 = arith.constant 0 : index
    %8 = vector.load %arg6[%c0_11, %c0_12] : memref<1x32xf32, #tpu.memory_space<vmem>>, vector<1x32xf32>
    %9 = vector.broadcast %8 : vector<1x32xf32> to vector<16x32xf32>
    %10 = arith.addf %7, %9 : vector<16x32xf32>
    %c0_13 = arith.constant 0 : index
    %c0_14 = arith.constant 0 : index
    %11 = vector.load %arg7[%c0_13, %c0_14] : memref<32x8xf32, #tpu.memory_space<vmem>>, vector<32x8xf32>
    %cst_15 = arith.constant dense<0.000000e+00> : vector<16x8xf32>
    %12 = tpu.matmul %10, %11, %cst_15 {dimension_numbers = #tpu.dot_dimension_numbers<[1], [0], [0], [1], [0, 0, 1, 1], [], []>} : vector<16x32xf32>, vector<32x8xf32>, vector<16x8xf32> -> vector<16x8xf32>
    %c0_16 = arith.constant 0 : index
    %c0_17 = arith.constant 0 : index
    %13 = vector.load %arg8[%c0_16, %c0_17] : memref<8x32xf32, #tpu.memory_space<vmem>>, vector<8x32xf32>
    %cst_18 = arith.constant dense<0.000000e+00> : vector<16x32xf32>
    %14 = tpu.matmul %12, %13, %cst_18 {dimension_numbers = #tpu.dot_dimension_numbers<[1], [0], [0], [1], [0, 0, 1, 1], [], []>} : vector<16x8xf32>, vector<8x32xf32>, vector<16x32xf32> -> vector<16x32xf32>
    %cst_19 = arith.constant 1.250000e-01 : f32
    %15 = vector.broadcast %cst_19 : f32 to vector<16x32xf32>
    %16 = arith.mulf %14, %15 : vector<16x32xf32>
    %17 = arith.addf %10, %16 : vector<16x32xf32>
    %18 = vector.shape_cast %3 : vector<16x32xf32> to vector<2x8x32xf32>
    %19 = vector.shape_cast %5 : vector<16x32xf32> to vector<2x8x32xf32>
    %20 = vector.shape_cast %17 : vector<16x32xf32> to vector<2x8x32xf32>
    %21 = vector.extract_strided_slice %18 {offsets = [0, 0, 0], sizes = [2, 8, 8], strides = [1, 1, 1]} : vector<2x8x32xf32> to vector<2x8x8xf32>
    %22 = vector.extract_strided_slice %19 {offsets = [0, 0, 0], sizes = [2, 8, 8], strides = [1, 1, 1]} : vector<2x8x32xf32> to vector<2x8x8xf32>
    "tpu.trace_start"() <{level = 10 : i32, message = "bnd,bmd->bnm"}> : () -> ()
    %cst_20 = arith.constant dense<0.000000e+00> : vector<2x8x8xf32>
    %23 = tpu.matmul %21, %22, %cst_20 {dimension_numbers = #tpu.dot_dimension_numbers<[2], [2], [1], [1], [0, 0, 0, 1, 1, 1], [0], [0]>} : vector<2x8x8xf32>, vector<2x8x8xf32>, vector<2x8x8xf32> -> vector<2x8x8xf32>
    "tpu.trace_stop"() : () -> ()
    %cst_21 = arith.constant dense<0xFF800000> : vector<2x8xf32>
    %24 = vector.multi_reduction <maximumf>, %23, %cst_21 [2] : vector<2x8x8xf32> to vector<2x8xf32>
    %25 = vector.shape_cast %24 : vector<2x8xf32> to vector<2x8x1xf32>
    %26 = vector.broadcast %25 : vector<2x8x1xf32> to vector<2x8x8xf32>
    %27 = arith.subf %23, %26 : vector<2x8x8xf32>
    %28 = math.exp %27 : vector<2x8x8xf32>
    %cst_22 = arith.constant dense<0.000000e+00> : vector<2x8xf32>
    %29 = vector.multi_reduction <add>, %28, %cst_22 [2] : vector<2x8x8xf32> to vector<2x8xf32>
    %30 = vector.shape_cast %29 : vector<2x8xf32> to vector<2x8x1xf32>
    %31 = tpu.reciprocal %30 {approx = true} : vector<2x8x1xf32> -> vector<2x8x1xf32>
    %32 = vector.broadcast %31 : vector<2x8x1xf32> to vector<2x8x8xf32>
    %33 = arith.mulf %28, %32 : vector<2x8x8xf32>
    %34 = vector.extract_strided_slice %20 {offsets = [0, 0, 0], sizes = [2, 8, 8], strides = [1, 1, 1]} : vector<2x8x32xf32> to vector<2x8x8xf32>
    "tpu.trace_start"() <{level = 10 : i32, message = "bnm,bmd->bnd"}> : () -> ()
    %cst_23 = arith.constant dense<0.000000e+00> : vector<2x8x8xf32>
    %35 = tpu.matmul %33, %34, %cst_23 {dimension_numbers = #tpu.dot_dimension_numbers<[2], [1], [1], [2], [0, 0, 0, 1, 1, 2], [0], [0]>} : vector<2x8x8xf32>, vector<2x8x8xf32>, vector<2x8x8xf32> -> vector<2x8x8xf32>
    "tpu.trace_stop"() : () -> ()
    %36 = vector.shape_cast %35 : vector<2x8x8xf32> to vector<16x8xf32>
    %c0_24 = arith.constant 0 : index
    %c0_25 = arith.constant 0 : index
    %37 = vector.load %arg12[%c0_24, %c0_25] : memref<16x32xf32, #tpu.memory_space<vmem>>, vector<16x8xf32>
    tpu.vector_store %arg12[%c0_24, %c0_25], %36 {strides = array<i32>} : memref<16x32xf32, #tpu.memory_space<vmem>>, vector<16x8xf32>,
    %38 = vector.extract_strided_slice %18 {offsets = [0, 0, 8], sizes = [2, 8, 8], strides = [1, 1, 1]} : vector<2x8x32xf32> to vector<2x8x8xf32>
    %39 = vector.extract_strided_slice %19 {offsets = [0, 0, 8], sizes = [2, 8, 8], strides = [1, 1, 1]} : vector<2x8x32xf32> to vector<2x8x8xf32>
    "tpu.trace_start"() <{level = 10 : i32, message = "bnd,bmd->bnm"}> : () -> ()
    %cst_26 = arith.constant dense<0.000000e+00> : vector<2x8x8xf32>
    %40 = tpu.matmul %38, %39, %cst_26 {dimension_numbers = #tpu.dot_dimension_numbers<[2], [2], [1], [1], [0, 0, 0, 1, 1, 1], [0], [0]>} : vector<2x8x8xf32>, vector<2x8x8xf32>, vector<2x8x8xf32> -> vector<2x8x8xf32>
    "tpu.trace_stop"() : () -> ()
    %cst_27 = arith.constant dense<0xFF800000> : vector<2x8xf32>
    %41 = vector.multi_reduction <maximumf>, %40, %cst_27 [2] : vector<2x8x8xf32> to vector<2x8xf32>
    %42 = vector.shape_cast %41 : vector<2x8xf32> to vector<2x8x1xf32>
    %43 = vector.broadcast %42 : vector<2x8x1xf32> to vector<2x8x8xf32>
    %44 = arith.subf %40, %43 : vector<2x8x8xf32>
    %45 = math.exp %44 : vector<2x8x8xf32>
    %cst_28 = arith.constant dense<0.000000e+00> : vector<2x8xf32>
    %46 = vector.multi_reduction <add>, %45, %cst_28 [2] : vector<2x8x8xf32> to vector<2x8xf32>
    %47 = vector.shape_cast %46 : vector<2x8xf32> to vector<2x8x1xf32>
    %48 = tpu.reciprocal %47 {approx = true} : vector<2x8x1xf32> -> vector<2x8x1xf32>
    %49 = vector.broadcast %48 : vector<2x8x1xf32> to vector<2x8x8xf32>
    %50 = arith.mulf %45, %49 : vector<2x8x8xf32>
    %51 = vector.extract_strided_slice %20 {offsets = [0, 0, 8], sizes = [2, 8, 8], strides = [1, 1, 1]} : vector<2x8x32xf32> to vector<2x8x8xf32>
    "tpu.trace_start"() <{level = 10 : i32, message = "bnm,bmd->bnd"}> : () -> ()
    %cst_29 = arith.constant dense<0.000000e+00> : vector<2x8x8xf32>
    %52 = tpu.matmul %50, %51, %cst_29 {dimension_numbers = #tpu.dot_dimension_numbers<[2], [1], [1], [2], [0, 0, 0, 1, 1, 2], [0], [0]>} : vector<2x8x8xf32>, vector<2x8x8xf32>, vector<2x8x8xf32> -> vector<2x8x8xf32>
    "tpu.trace_stop"() : () -> ()
    %53 = vector.shape_cast %52 : vector<2x8x8xf32> to vector<16x8xf32>
    %c0_30 = arith.constant 0 : index
    %c8 = arith.constant 8 : index
    %54 = vector.load %arg12[%c0_30, %c8] : memref<16x32xf32, #tpu.memory_space<vmem>>, vector<16x8xf32>
    tpu.vector_store %arg12[%c0_30, %c8], %53 {strides = array<i32>} : memref<16x32xf32, #tpu.memory_space<vmem>>, vector<16x8xf32>,
    %55 = vector.extract_strided_slice %18 {offsets = [0, 0, 16], sizes = [2, 8, 8], strides = [1, 1, 1]} : vector<2x8x32xf32> to vector<2x8x8xf32>
    %56 = vector.extract_strided_slice %19 {offsets = [0, 0, 16], sizes = [2, 8, 8], strides = [1, 1, 1]} : vector<2x8x32xf32> to vector<2x8x8xf32>
    "tpu.trace_start"() <{level = 10 : i32, message = "bnd,bmd->bnm"}> : () -> ()
    %cst_31 = arith.constant dense<0.000000e+00> : vector<2x8x8xf32>
    %57 = tpu.matmul %55, %56, %cst_31 {dimension_numbers = #tpu.dot_dimension_numbers<[2], [2], [1], [1], [0, 0, 0, 1, 1, 1], [0], [0]>} : vector<2x8x8xf32>, vector<2x8x8xf32>, vector<2x8x8xf32> -> vector<2x8x8xf32>
    "tpu.trace_stop"() : () -> ()
    %cst_32 = arith.constant dense<0xFF800000> : vector<2x8xf32>
    %58 = vector.multi_reduction <maximumf>, %57, %cst_32 [2] : vector<2x8x8xf32> to vector<2x8xf32>
    %59 = vector.shape_cast %58 : vector<2x8xf32> to vector<2x8x1xf32>
    %60 = vector.broadcast %59 : vector<2x8x1xf32> to vector<2x8x8xf32>
    %61 = arith.subf %57, %60 : vector<2x8x8xf32>
    %62 = math.exp %61 : vector<2x8x8xf32>
    %cst_33 = arith.constant dense<0.000000e+00> : vector<2x8xf32>
    %63 = vector.multi_reduction <add>, %62, %cst_33 [2] : vector<2x8x8xf32> to vector<2x8xf32>
    %64 = vector.shape_cast %63 : vector<2x8xf32> to vector<2x8x1xf32>
    %65 = tpu.reciprocal %64 {approx = true} : vector<2x8x1xf32> -> vector<2x8x1xf32>
    %66 = vector.broadcast %65 : vector<2x8x1xf32> to vector<2x8x8xf32>
    %67 = arith.mulf %62, %66 : vector<2x8x8xf32>
    %68 = vector.extract_strided_slice %20 {offsets = [0, 0, 16], sizes = [2, 8, 8], strides = [1, 1, 1]} : vector<2x8x32xf32> to vector<2x8x8xf32>
    "tpu.trace_start"() <{level = 10 : i32, message = "bnm,bmd->bnd"}> : () -> ()
    %cst_34 = arith.constant dense<0.000000e+00> : vector<2x8x8xf32>
    %69 = tpu.matmul %67, %68, %cst_34 {dimension_numbers = #tpu.dot_dimension_numbers<[2], [1], [1], [2], [0, 0, 0, 1, 1, 2], [0], [0]>} : vector<2x8x8xf32>, vector<2x8x8xf32>, vector<2x8x8xf32> -> vector<2x8x8xf32>
    "tpu.trace_stop"() : () -> ()
    %70 = vector.shape_cast %69 : vector<2x8x8xf32> to vector<16x8xf32>
    %c0_35 = arith.constant 0 : index
    %c16 = arith.constant 16 : index
    %71 = vector.load %arg12[%c0_35, %c16] : memref<16x32xf32, #tpu.memory_space<vmem>>, vector<16x8xf32>
    tpu.vector_store %arg12[%c0_35, %c16], %70 {strides = array<i32>} : memref<16x32xf32, #tpu.memory_space<vmem>>, vector<16x8xf32>,
    %72 = vector.extract_strided_slice %18 {offsets = [0, 0, 24], sizes = [2, 8, 8], strides = [1, 1, 1]} : vector<2x8x32xf32> to vector<2x8x8xf32>
    %73 = vector.extract_strided_slice %19 {offsets = [0, 0, 24], sizes = [2, 8, 8], strides = [1, 1, 1]} : vector<2x8x32xf32> to vector<2x8x8xf32>
    "tpu.trace_start"() <{level = 10 : i32, message = "bnd,bmd->bnm"}> : () -> ()
    %cst_36 = arith.constant dense<0.000000e+00> : vector<2x8x8xf32>
    %74 = tpu.matmul %72, %73, %cst_36 {dimension_numbers = #tpu.dot_dimension_numbers<[2], [2], [1], [1], [0, 0, 0, 1, 1, 1], [0], [0]>} : vector<2x8x8xf32>, vector<2x8x8xf32>, vector<2x8x8xf32> -> vector<2x8x8xf32>
    "tpu.trace_stop"() : () -> ()
    %cst_37 = arith.constant dense<0xFF800000> : vector<2x8xf32>
    %75 = vector.multi_reduction <maximumf>, %74, %cst_37 [2] : vector<2x8x8xf32> to vector<2x8xf32>
    %76 = vector.shape_cast %75 : vector<2x8xf32> to vector<2x8x1xf32>
    %77 = vector.broadcast %76 : vector<2x8x1xf32> to vector<2x8x8xf32>
    %78 = arith.subf %74, %77 : vector<2x8x8xf32>
    %79 = math.exp %78 : vector<2x8x8xf32>
    %cst_38 = arith.constant dense<0.000000e+00> : vector<2x8xf32>
    %80 = vector.multi_reduction <add>, %79, %cst_38 [2] : vector<2x8x8xf32> to vector<2x8xf32>
    %81 = vector.shape_cast %80 : vector<2x8xf32> to vector<2x8x1xf32>
    %82 = tpu.reciprocal %81 {approx = true} : vector<2x8x1xf32> -> vector<2x8x1xf32>
    %83 = vector.broadcast %82 : vector<2x8x1xf32> to vector<2x8x8xf32>
    %84 = arith.mulf %79, %83 : vector<2x8x8xf32>
    %85 = vector.extract_strided_slice %20 {offsets = [0, 0, 24], sizes = [2, 8, 8], strides = [1, 1, 1]} : vector<2x8x32xf32> to vector<2x8x8xf32>
    "tpu.trace_start"() <{level = 10 : i32, message = "bnm,bmd->bnd"}> : () -> ()
    %cst_39 = arith.constant dense<0.000000e+00> : vector<2x8x8xf32>
    %86 = tpu.matmul %84, %85, %cst_39 {dimension_numbers = #tpu.dot_dimension_numbers<[2], [1], [1], [2], [0, 0, 0, 1, 1, 2], [0], [0]>} : vector<2x8x8xf32>, vector<2x8x8xf32>, vector<2x8x8xf32> -> vector<2x8x8xf32>
    "tpu.trace_stop"() : () -> ()
    %87 = vector.shape_cast %86 : vector<2x8x8xf32> to vector<16x8xf32>
    %c0_40 = arith.constant 0 : index
    %c24 = arith.constant 24 : index
    %88 = vector.load %arg12[%c0_40, %c24] : memref<16x32xf32, #tpu.memory_space<vmem>>, vector<16x8xf32>
    tpu.vector_store %arg12[%c0_40, %c24], %87 {strides = array<i32>} : memref<16x32xf32, #tpu.memory_space<vmem>>, vector<16x8xf32>,
    %c0_41 = arith.constant 0 : index
    %c0_42 = arith.constant 0 : index
    %89 = vector.load %arg12[%c0_41, %c0_42] : memref<16x32xf32, #tpu.memory_space<vmem>>, vector<16x32xf32>
    %c0_43 = arith.constant 0 : index
    %c0_44 = arith.constant 0 : index
    %90 = vector.load %arg9[%c0_43, %c0_44] : memref<32x32xf32, #tpu.memory_space<vmem>>, vector<32x32xf32>
    %cst_45 = arith.constant dense<0.000000e+00> : vector<16x32xf32>
    %91 = tpu.matmul %89, %90, %cst_45 {dimension_numbers = #tpu.dot_dimension_numbers<[1], [0], [0], [1], [0, 0, 1, 1], [], []>} : vector<16x32xf32>, vector<32x32xf32>, vector<16x32xf32> -> vector<16x32xf32>
    %c0_46 = arith.constant 0 : index
    %c0_47 = arith.constant 0 : index
    %92 = vector.load %arg10[%c0_46, %c0_47] : memref<1x32xf32, #tpu.memory_space<vmem>>, vector<1x32xf32>
    %93 = vector.broadcast %92 : vector<1x32xf32> to vector<16x32xf32>
    %94 = arith.addf %91, %93 : vector<16x32xf32>
    %c0_48 = arith.constant 0 : index
    %c0_49 = arith.constant 0 : index
    %95 = vector.load %arg11[%c0_48, %c0_49] : memref<16x32xf32, #tpu.memory_space<vmem>>, vector<16x32xf32>
    tpu.vector_store %arg11[%c0_48, %c0_49], %94 {strides = array<i32>} : memref<16x32xf32, #tpu.memory_space<vmem>>, vector<16x32xf32>,
    return
  }
  func.func @transform_0(%arg0: i32) -> (i32, i32) {
    %c0_i32 = arith.constant 0 : i32
    %c0_i32_0 = arith.constant 0 : i32
    return %arg0, %c0_i32 : i32, i32
  }
  func.func @transform_1(%arg0: i32) -> (i32, i32) {
    %c0_i32 = arith.constant 0 : i32
    %c0_i32_0 = arith.constant 0 : i32
    return %arg0, %c0_i32 : i32, i32
  }
  func.func @transform_2(%arg0: i32) -> (i32, i32) {
    %c0_i32 = arith.constant 0 : i32
    %c0_i32_0 = arith.constant 0 : i32
    %c0_i32_1 = arith.constant 0 : i32
    return %c0_i32, %c0_i32_0 : i32, i32
  }
  func.func @transform_3(%arg0: i32) -> (i32, i32) {
    %c0_i32 = arith.constant 0 : i32
    %c0_i32_0 = arith.constant 0 : i32
    %c0_i32_1 = arith.constant 0 : i32
    return %c0_i32, %c0_i32_0 : i32, i32
  }
  func.func @transform_4(%arg0: i32) -> (i32, i32) {
    %c0_i32 = arith.constant 0 : i32
    %c0_i32_0 = arith.constant 0 : i32
    %c0_i32_1 = arith.constant 0 : i32
    return %c0_i32, %c0_i32_0 : i32, i32
  }
  func.func @transform_5(%arg0: i32) -> (i32, i32) {
    %c0_i32 = arith.constant 0 : i32
    %c0_i32_0 = arith.constant 0 : i32
    %c0_i32_1 = arith.constant 0 : i32
    return %c0_i32, %c0_i32_0 : i32, i32
  }
  func.func @transform_6(%arg0: i32) -> (i32, i32) {
    %c0_i32 = arith.constant 0 : i32
    %c0_i32_0 = arith.constant 0 : i32
    %c0_i32_1 = arith.constant 0 : i32
    return %c0_i32, %c0_i32_0 : i32, i32
  }
  func.func @transform_7(%arg0: i32) -> (i32, i32) {
    %c0_i32 = arith.constant 0 : i32
    %c0_i32_0 = arith.constant 0 : i32
    %c0_i32_1 = arith.constant 0 : i32
    return %c0_i32, %c0_i32_0 : i32, i32
  }
  func.func @transform_8(%arg0: i32) -> (i32, i32) {
    %c0_i32 = arith.constant 0 : i32
    %c0_i32_0 = arith.constant 0 : i32
    %c0_i32_1 = arith.constant 0 : i32
    return %c0_i32, %c0_i32_0 : i32, i32
  }
  func.func @transform_9(%arg0: i32) -> (i32, i32) {
    %c0_i32 = arith.constant 0 : i32
    %c0_i32_0 = arith.constant 0 : i32
    %c0_i32_1 = arith.constant 0 : i32
    return %c0_i32, %c0_i32_0 : i32, i32
  }
  func.func @transform_10(%arg0: i32) -> (i32, i32) {
    %c0_i32 = arith.constant 0 : i32
    %c0_i32_0 = arith.constant 0 : i32
    return %arg0, %c0_i32 : i32, i32
  }
}

</mosaic_0001>

<llo_original>
// kernel: tpu_custom_call.1
$region0: #{tpu_custom_call.1}
  #allocation0 [shape = 'u32[]', space=smem, size = 0x4, offset = 0x4, fixed_abs, tag = 'smem constant byte address 0x4 - core index']
  #allocation1 [shape = 'u32[72,128]{1,0:T(1,128)}', space=vmem, size = 0x9000, scoped, tag = 'internal scratch']
  #allocation2 [shape = 'f32[16,32]{1,0:T(8,128)}', space=vmem, size = 0x2000, scoped, tag = 'scratch operand']
  %s0 = inlined_call_operand.vmem [shape: f32[64,32], index: 0, kind: input, shape index: {}]
  %s1 = inlined_call_operand.vmem [shape: f32[64,32], index: 1, kind: input, shape index: {}]
  %s2 = inlined_call_operand.vmem [shape: f32[32,32], index: 2, kind: input, shape index: {}]
  %s3 = inlined_call_operand.vmem [shape: f32[32,32], index: 3, kind: input, shape index: {}]
  %s4 = inlined_call_operand.vmem [shape: f32[32,32], index: 4, kind: input, shape index: {}]
  %s5 = inlined_call_operand.vmem [shape: f32[1,32], index: 5, kind: input, shape index: {}]
  %s6 = inlined_call_operand.vmem [shape: f32[32,8], index: 6, kind: input, shape index: {}]
  %s7 = inlined_call_operand.vmem [shape: f32[8,32], index: 7, kind: input, shape index: {}]
  %s8 = inlined_call_operand.vmem [shape: f32[32,32], index: 8, kind: input, shape index: {}]
  %s9 = inlined_call_operand.vmem [shape: f32[1,32], index: 9, kind: input, shape index: {}]
  %s10 = inlined_call_operand.vmem [shape: f32[64,32], index: 10, kind: output, shape index: {}]
  %s11 = sld [smem:[#allocation0]]
  $region73: #{tpu_custom_call.1} parent=0
    _
  %s13 = ssub.s32 1, %s11
  %s14 = scalar_select 0, %s13, %s11
  loop: start=0, step=1, limit=6
  $region2: #{tpu_custom_call.1} parent=0 // loop_pre_header
    _
  $region3: #{tpu_custom_call.1} parent=0 // loop_header
    %s16 = sphi 0, %s20
    %p17 = scmp.ge.s32.totalorder %s16, 6
    %s26 = sphi 0, %s28
    %s29 = sphi 0, %s26
    %s30 = sphi 0, %s29
    %s46 = sphi 0, %s30
    %s52 = sphi 0, %s54
    %s55 = sphi 0, %s52
    %s56 = sphi 0, %s55
    %s72 = sphi 0, %s56
    %s76 = sphi 0, %s76
    %s78 = sphi 0, %s76
    %s79 = sphi 0, %s78
    %s93 = sphi 0, %s79
    %s97 = sphi 0, %s97
    %s99 = sphi 0, %s97
    %s100 = sphi 0, %s99
    %s114 = sphi 0, %s100
    %s118 = sphi 0, %s118
    %s120 = sphi 0, %s118
    %s121 = sphi 0, %s120
    %s135 = sphi 0, %s121
    %s139 = sphi 0, %s139
    %s141 = sphi 0, %s139
    %s142 = sphi 0, %s141
    %s156 = sphi 0, %s142
    %s160 = sphi 0, %s160
    %s162 = sphi 0, %s160
    %s163 = sphi 0, %s162
    %s177 = sphi 0, %s163
    %s181 = sphi 0, %s181
    %s183 = sphi 0, %s181
    %s184 = sphi 0, %s183
    %s198 = sphi 0, %s184
    %s202 = sphi 0, %s202
    %s204 = sphi 0, %s202
    %s205 = sphi 0, %s204
    %s219 = sphi 0, %s205
    %s223 = sphi 0, %s223
    %s225 = sphi 0, %s223
    %s226 = sphi 0, %s225
    %s240 = sphi 0, %s226
    %s246 = sphi 0, %s248
    %s249 = sphi 0, %s246
    %s250 = sphi 0, %s249
    %s266 = sphi 0, %s250
  $region4: #{tpu_custom_call.1} parent=0 // loop_header_branch
    %19 = sbr.rel (%p17) target = $region8
  $region5: #{tpu_custom_call.1} parent=0 // loop_body
    %s21 = ssub.s32 %s16, 1
    %s22 = ssub.s32 %s16, 2
    %s23 = sadd.s32 %s16, 1
    %s24 = ssub.s32 %s16, %s23
    %p25 = scmp.eq.s32.totalorder %s24, 0
    %s27 = sadd.s32 %s26, 1
    %s28 = scalar_select %p25, %s26, %s27
    %p31 = pneg %p25
    %p32 = scmp.eq.s32.totalorder %s16, 3
    %p33 = por %p31, %p32
    %p34 = scmp.ne.s32.totalorder %s26, %s29
    %p35 = scmp.eq.s32.totalorder %s16, 0
    %p36 = por %p34, %p35
    %p37 = scmp.ne.s32.totalorder %s26, %s29
    %p38 = scmp.eq.s32.totalorder %s21, 3
    %p39 = por %p37, %p38
    %p40 = scmp.ne.s32.totalorder %s29, %s30
    %p41 = scmp.eq.s32.totalorder %s21, 0
    %p42 = por %p40, %p41
    %p43 = scmp.ne.s32.totalorder %s29, %s30
    %p44 = scmp.eq.s32.totalorder %s22, 3
    %p45 = por %p43, %p44
    %p47 = scmp.ne.s32.totalorder %s30, %s46
    %p48 = scmp.eq.s32.totalorder %s22, 0
    %p49 = por %p47, %p48
    %s50 = ssub.s32 %s16, %s23
    %p51 = scmp.eq.s32.totalorder %s50, 0
    %s53 = sadd.s32 %s52, 1
    %s54 = scalar_select %p51, %s52, %s53
    %p57 = pneg %p51
    %p58 = scmp.eq.s32.totalorder %s16, 3
    %p59 = por %p57, %p58
    %p60 = scmp.ne.s32.totalorder %s52, %s55
    %p61 = scmp.eq.s32.totalorder %s16, 0
    %p62 = por %p60, %p61
    %p63 = scmp.ne.s32.totalorder %s52, %s55
    %p64 = scmp.eq.s32.totalorder %s21, 3
    %p65 = por %p63, %p64
    %p66 = scmp.ne.s32.totalorder %s55, %s56
    %p67 = scmp.eq.s32.totalorder %s21, 0
    %p68 = por %p66, %p67
    %p69 = scmp.ne.s32.totalorder %s55, %s56
    %p70 = scmp.eq.s32.totalorder %s22, 3
    %p71 = por %p69, %p70
    %p73 = scmp.ne.s32.totalorder %s56, %s72
    %p74 = scmp.eq.s32.totalorder %s22, 0
    %p75 = por %p73, %p74
    %s77 = sadd.s32 %s76, 1
    %p80 = scmp.eq.s32.totalorder %s16, 3
    %p81 = scmp.ne.s32.totalorder %s76, %s78
    %p82 = scmp.eq.s32.totalorder %s16, 0
    %p83 = por %p81, %p82
    %p84 = scmp.ne.s32.totalorder %s76, %s78
    %p85 = scmp.eq.s32.totalorder %s21, 3
    %p86 = por %p84, %p85
    %p87 = scmp.ne.s32.totalorder %s78, %s79
    %p88 = scmp.eq.s32.totalorder %s21, 0
    %p89 = por %p87, %p88
    %p90 = scmp.ne.s32.totalorder %s78, %s79
    %p91 = scmp.eq.s32.totalorder %s22, 3
    %p92 = por %p90, %p91
    %p94 = scmp.ne.s32.totalorder %s79, %s93
    %p95 = scmp.eq.s32.totalorder %s22, 0
    %p96 = por %p94, %p95
    %s98 = sadd.s32 %s97, 1
    %p101 = scmp.eq.s32.totalorder %s16, 3
    %p102 = scmp.ne.s32.totalorder %s97, %s99
    %p103 = scmp.eq.s32.totalorder %s16, 0
    %p104 = por %p102, %p103
    %p105 = scmp.ne.s32.totalorder %s97, %s99
    %p106 = scmp.eq.s32.totalorder %s21, 3
    %p107 = por %p105, %p106
    %p108 = scmp.ne.s32.totalorder %s99, %s100
    %p109 = scmp.eq.s32.totalorder %s21, 0
    %p110 = por %p108, %p109
    %p111 = scmp.ne.s32.totalorder %s99, %s100
    %p112 = scmp.eq.s32.totalorder %s22, 3
    %p113 = por %p111, %p112
    %p115 = scmp.ne.s32.totalorder %s100, %s114
    %p116 = scmp.eq.s32.totalorder %s22, 0
    %p117 = por %p115, %p116
    %s119 = sadd.s32 %s118, 1
    %p122 = scmp.eq.s32.totalorder %s16, 3
    %p123 = scmp.ne.s32.totalorder %s118, %s120
    %p124 = scmp.eq.s32.totalorder %s16, 0
    %p125 = por %p123, %p124
    %p126 = scmp.ne.s32.totalorder %s118, %s120
    %p127 = scmp.eq.s32.totalorder %s21, 3
    %p128 = por %p126, %p127
    %p129 = scmp.ne.s32.totalorder %s120, %s121
    %p130 = scmp.eq.s32.totalorder %s21, 0
    %p131 = por %p129, %p130
    %p132 = scmp.ne.s32.totalorder %s120, %s121
    %p133 = scmp.eq.s32.totalorder %s22, 3
    %p134 = por %p132, %p133
    %p136 = scmp.ne.s32.totalorder %s121, %s135
    %p137 = scmp.eq.s32.totalorder %s22, 0
    %p138 = por %p136, %p137
    %s140 = sadd.s32 %s139, 1
    %p143 = scmp.eq.s32.totalorder %s16, 3
    %p144 = scmp.ne.s32.totalorder %s139, %s141
    %p145 = scmp.eq.s32.totalorder %s16, 0
    %p146 = por %p144, %p145
    %p147 = scmp.ne.s32.totalorder %s139, %s141
    %p148 = scmp.eq.s32.totalorder %s21, 3
    %p149 = por %p147, %p148
    %p150 = scmp.ne.s32.totalorder %s141, %s142
    %p151 = scmp.eq.s32.totalorder %s21, 0
    %p152 = por %p150, %p151
    %p153 = scmp.ne.s32.totalorder %s141, %s142
    %p154 = scmp.eq.s32.totalorder %s22, 3
    %p155 = por %p153, %p154
    %p157 = scmp.ne.s32.totalorder %s142, %s156
    %p158 = scmp.eq.s32.totalorder %s22, 0
    %p159 = por %p157, %p158
    %s161 = sadd.s32 %s160, 1
    %p164 = scmp.eq.s32.totalorder %s16, 3
    %p165 = scmp.ne.s32.totalorder %s160, %s162
    %p166 = scmp.eq.s32.totalorder %s16, 0
    %p167 = por %p165, %p166
    %p168 = scmp.ne.s32.totalorder %s160, %s162
    %p169 = scmp.eq.s32.totalorder %s21, 3
    %p170 = por %p168, %p169
    %p171 = scmp.ne.s32.totalorder %s162, %s163
    %p172 = scmp.eq.s32.totalorder %s21, 0
    %p173 = por %p171, %p172
    %p174 = scmp.ne.s32.totalorder %s162, %s163
    %p175 = scmp.eq.s32.totalorder %s22, 3
    %p176 = por %p174, %p175
    %p178 = scmp.ne.s32.totalorder %s163, %s177
    %p179 = scmp.eq.s32.totalorder %s22, 0
    %p180 = por %p178, %p179
    %s182 = sadd.s32 %s181, 1
    %p185 = scmp.eq.s32.totalorder %s16, 3
    %p186 = scmp.ne.s32.totalorder %s181, %s183
    %p187 = scmp.eq.s32.totalorder %s16, 0
    %p188 = por %p186, %p187
    %p189 = scmp.ne.s32.totalorder %s181, %s183
    %p190 = scmp.eq.s32.totalorder %s21, 3
    %p191 = por %p189, %p190
    %p192 = scmp.ne.s32.totalorder %s183, %s184
    %p193 = scmp.eq.s32.totalorder %s21, 0
    %p194 = por %p192, %p193
    %p195 = scmp.ne.s32.totalorder %s183, %s184
    %p196 = scmp.eq.s32.totalorder %s22, 3
    %p197 = por %p195, %p196
    %p199 = scmp.ne.s32.totalorder %s184, %s198
    %p200 = scmp.eq.s32.totalorder %s22, 0
    %p201 = por %p199, %p200
    %s203 = sadd.s32 %s202, 1
    %p206 = scmp.eq.s32.totalorder %s16, 3
    %p207 = scmp.ne.s32.totalorder %s202, %s204
    %p208 = scmp.eq.s32.totalorder %s16, 0
    %p209 = por %p207, %p208
    %p210 = scmp.ne.s32.totalorder %s202, %s204
    %p211 = scmp.eq.s32.totalorder %s21, 3
    %p212 = por %p210, %p211
    %p213 = scmp.ne.s32.totalorder %s204, %s205
    %p214 = scmp.eq.s32.totalorder %s21, 0
    %p215 = por %p213, %p214
    %p216 = scmp.ne.s32.totalorder %s204, %s205
    %p217 = scmp.eq.s32.totalorder %s22, 3
    %p218 = por %p216, %p217
    %p220 = scmp.ne.s32.totalorder %s205, %s219
    %p221 = scmp.eq.s32.totalorder %s22, 0
    %p222 = por %p220, %p221
    %s224 = sadd.s32 %s223, 1
    %p227 = scmp.eq.s32.totalorder %s16, 3
    %p228 = scmp.ne.s32.totalorder %s223, %s225
    %p229 = scmp.eq.s32.totalorder %s16, 0
    %p230 = por %p228, %p229
    %p231 = scmp.ne.s32.totalorder %s223, %s225
    %p232 = scmp.eq.s32.totalorder %s21, 3
    %p233 = por %p231, %p232
    %p234 = scmp.ne.s32.totalorder %s225, %s226
    %p235 = scmp.eq.s32.totalorder %s21, 0
    %p236 = por %p234, %p235
    %p237 = scmp.ne.s32.totalorder %s225, %s226
    %p238 = scmp.eq.s32.totalorder %s22, 3
    %p239 = por %p237, %p238
    %p241 = scmp.ne.s32.totalorder %s226, %s240
    %p242 = scmp.eq.s32.totalorder %s22, 0
    %p243 = por %p241, %p242
    %s244 = ssub.s32 %s16, %s23
    %p245 = scmp.eq.s32.totalorder %s244, 0
    %s247 = sadd.s32 %s246, 1
    %s248 = scalar_select %p245, %s246, %s247
    %p251 = pneg %p245
    %p252 = scmp.eq.s32.totalorder %s16, 3
    %p253 = por %p251, %p252
    %p254 = scmp.ne.s32.totalorder %s246, %s249
    %p255 = scmp.eq.s32.totalorder %s16, 0
    %p256 = por %p254, %p255
    %p257 = scmp.ne.s32.totalorder %s246, %s249
    %p258 = scmp.eq.s32.totalorder %s21, 3
    %p259 = por %p257, %p258
    %p260 = scmp.ne.s32.totalorder %s249, %s250
    %p261 = scmp.eq.s32.totalorder %s21, 0
    %p262 = por %p260, %p261
    %p263 = scmp.ne.s32.totalorder %s249, %s250
    %p264 = scmp.eq.s32.totalorder %s22, 3
    %p265 = por %p263, %p264
    %p267 = scmp.ne.s32.totalorder %s250, %s266
    %p268 = scmp.eq.s32.totalorder %s22, 0
    %p269 = por %p267, %p268
    %p270 = scmp.le.s32.totalorder 1, %s16
    %p271 = scmp.lt.s32.totalorder %s16, 5
    %p272 = pnand %p270, %p271
    %p273 = pneg %p272
    // Predicated region
    $region9: #{tpu_custom_call.1} parent=5 // pred_check
      _
    $region10: #{tpu_custom_call.1} parent=5 // pred_check_branch
      %275 = sbr.rel (%p272) target = $region12
    $region11: #{tpu_custom_call.1} parent=5 // pred_region
      %s276 = ssub.s32 %s16, 1
      // Predicated region
      $region13: #{tpu_custom_call.1} parent=11 // pred_check
        %p277 = pneg %p89
      $region14: #{tpu_custom_call.1} parent=11 // pred_check_branch
        %279 = sbr.rel (%p277) target = $region16
      $region15: #{tpu_custom_call.1} parent=11 // pred_region
        _
      $region16: #{tpu_custom_call.1} parent=11 // pred_fallthru
        _
      // Predicated region
      $region17: #{tpu_custom_call.1} parent=11 // pred_check
        %p280 = pneg %p110
      $region18: #{tpu_custom_call.1} parent=11 // pred_check_branch
        %282 = sbr.rel (%p280) target = $region20
      $region19: #{tpu_custom_call.1} parent=11 // pred_region
        _
      $region20: #{tpu_custom_call.1} parent=11 // pred_fallthru
        _
      // Predicated region
      $region21: #{tpu_custom_call.1} parent=11 // pred_check
        %p283 = pneg %p131
      $region22: #{tpu_custom_call.1} parent=11 // pred_check_branch
        %285 = sbr.rel (%p283) target = $region24
      $region23: #{tpu_custom_call.1} parent=11 // pred_region
        _
      $region24: #{tpu_custom_call.1} parent=11 // pred_fallthru
        _
      // Predicated region
      $region25: #{tpu_custom_call.1} parent=11 // pred_check
        %p286 = pneg %p152
      $region26: #{tpu_custom_call.1} parent=11 // pred_check_branch
        %288 = sbr.rel (%p286) target = $region28
      $region27: #{tpu_custom_call.1} parent=11 // pred_region
        _
      $region28: #{tpu_custom_call.1} parent=11 // pred_fallthru
        _
      // Predicated region
      $region29: #{tpu_custom_call.1} parent=11 // pred_check
        %p289 = pneg %p173
      $region30: #{tpu_custom_call.1} parent=11 // pred_check_branch
        %291 = sbr.rel (%p289) target = $region32
      $region31: #{tpu_custom_call.1} parent=11 // pred_region
        _
      $region32: #{tpu_custom_call.1} parent=11 // pred_fallthru
        _
      // Predicated region
      $region33: #{tpu_custom_call.1} parent=11 // pred_check
        %p292 = pneg %p194
      $region34: #{tpu_custom_call.1} parent=11 // pred_check_branch
        %294 = sbr.rel (%p292) target = $region36
      $region35: #{tpu_custom_call.1} parent=11 // pred_region
        _
      $region36: #{tpu_custom_call.1} parent=11 // pred_fallthru
        _
      // Predicated region
      $region37: #{tpu_custom_call.1} parent=11 // pred_check
        %p295 = pneg %p215
      $region38: #{tpu_custom_call.1} parent=11 // pred_check_branch
        %297 = sbr.rel (%p295) target = $region40
      $region39: #{tpu_custom_call.1} parent=11 // pred_region
        _
      $region40: #{tpu_custom_call.1} parent=11 // pred_fallthru
        _
      // Predicated region
      $region41: #{tpu_custom_call.1} parent=11 // pred_check
        %p298 = pneg %p236
      $region42: #{tpu_custom_call.1} parent=11 // pred_check_branch
        %300 = sbr.rel (%p298) target = $region44
      $region43: #{tpu_custom_call.1} parent=11 // pred_region
        _
      $region44: #{tpu_custom_call.1} parent=11 // pred_fallthru
        _
    $region12: #{tpu_custom_call.1} parent=5 // pred_fallthru
      _
    %p301 = scmp.lt.s32.totalorder %s16, 4
    // Predicated region
    $region45: #{tpu_custom_call.1} parent=5 // pred_check
      %p302 = pneg %p301
    $region46: #{tpu_custom_call.1} parent=5 // pred_check_branch
      %304 = sbr.rel (%p302) target = $region48
    $region47: #{tpu_custom_call.1} parent=5 // pred_region
      // Predicated region
      $region49: #{tpu_custom_call.1} parent=47 // pred_check
        %p305 = pneg %p36
      $region50: #{tpu_custom_call.1} parent=47 // pred_check_branch
        %307 = sbr.rel (%p305) target = $region52
      $region51: #{tpu_custom_call.1} parent=47 // pred_region
        %s308 = smul.u32 2, %s16
        %p309 = scmp.lt.s32.totalorder %s308, 7
        %s310 = scalar_select %p309, %s308, 7
        %s311 = smul.addr %s310, 8
        %s312 = scalar_lea.vmem %s0, %s311
        %s313 = smul.u32 2, %s16
      $region52: #{tpu_custom_call.1} parent=47 // pred_fallthru
        _
      // Predicated region
      $region53: #{tpu_custom_call.1} parent=47 // pred_check
        %p314 = pneg %p62
      $region54: #{tpu_custom_call.1} parent=47 // pred_check_branch
        %316 = sbr.rel (%p314) target = $region56
      $region55: #{tpu_custom_call.1} parent=47 // pred_region
        %s317 = smul.u32 2, %s16
        %p318 = scmp.lt.s32.totalorder %s317, 7
        %s319 = scalar_select %p318, %s317, 7
        %s320 = smul.addr %s319, 8
        %s321 = scalar_lea.vmem %s1, %s320
        %s322 = smul.u32 2, %s16
      $region56: #{tpu_custom_call.1} parent=47 // pred_fallthru
        _
    $region48: #{tpu_custom_call.1} parent=5 // pred_fallthru
      _
    %p323 = scmp.le.s32.totalorder 1, %s16
    %p324 = scmp.lt.s32.totalorder %s16, 5
    %p325 = pnand %p323, %p324
    %p326 = pneg %p325
    // Predicated region
    $region57: #{tpu_custom_call.1} parent=5 // pred_check
      _
    $region58: #{tpu_custom_call.1} parent=5 // pred_check_branch
      %328 = sbr.rel (%p325) target = $region60
    $region59: #{tpu_custom_call.1} parent=5 // pred_region
      %s329 = ssub.s32 %s16, 1
      %s330 = smul.u32 2, %s21
      %p331 = scmp.lt.s32.totalorder %s330, 7
      %s332 = scalar_select %p331, %s330, 7
      %s333 = smul.addr %s332, 8
      %s334 = scalar_lea.vmem %s0, %s333
      %p335 = pneg %p42
      %p336 = pneg %p39
      %s337 = smul.u32 2, %s21
      %p338 = scmp.lt.s32.totalorder %s337, 7
      %s339 = scalar_select %p338, %s337, 7
      %s340 = smul.addr %s339, 8
      %s341 = scalar_lea.vmem %s1, %s340
      %p342 = pneg %p68
      %p343 = pneg %p65
      %p344 = pneg %p89
      %p345 = pneg %p86
      %p346 = pneg %p110
      %p347 = pneg %p107
      %p348 = pneg %p131
      %p349 = pneg %p128
      %p350 = pneg %p152
      %p351 = pneg %p149
      %p352 = pneg %p173
      %p353 = pneg %p170
      %p354 = pneg %p194
      %p355 = pneg %p191
      %p356 = pneg %p215
      %p357 = pneg %p212
      %p358 = pneg %p236
      %p359 = pneg %p233
      %p360 = pneg %p262
      %p361 = pneg %p259
      %s362 = smul.u32 2, %s21
      %p363 = scmp.lt.s32.totalorder %s362, 7
      %s364 = scalar_select %p363, %s362, 7
      %s365 = smul.addr %s364, 8
      %s366 = scalar_lea.vmem %s10, %s365
      %s367 = smul.u32 2, %s21
      %p368 = scmp.lt.s32.totalorder %s367, 7
      %s369 = scalar_select %p368, %s367, 7
      %s370 = smul.addr %s369, 8
      %s371 = scalar_lea.vmem %s0, %s370
      %s372 = smul.u32 2, %s21
      %s373 = smul.u32 2, %s21
      %p374 = scmp.lt.s32.totalorder %s373, 7
      %s375 = scalar_select %p374, %s373, 7
      %s376 = smul.addr %s375, 8
      %s377 = scalar_lea.vmem %s1, %s376
      %s378 = smul.u32 2, %s21
      %s379 = smul.u32 2, %s21
      %p380 = scmp.lt.s32.totalorder %s379, 7
      %s381 = scalar_select %p380, %s379, 7
      %s382 = smul.addr %s381, 8
      %s383 = scalar_lea.vmem %s10, %s382
      %s384 = smul.u32 2, %s21
      %v385 = vld [vmem:[%s371] sm:$0xff]
      %v386 = vld [vmem:[%s371 + $0x8] sm:$0xff]
      %v387 = vld [vmem:[%s377] sm:$0xff]
      %v388 = vld [vmem:[%s377 + $0x8] sm:$0xff]
      %v389 = vld [vmem:[%s2] sm:$0xff]
      %v390 = vld [vmem:[%s2 + $0x8] sm:$0xff]
      %v391 = vld [vmem:[%s2 + $0x10] sm:$0xff]
      %v392 = vld [vmem:[%s2 + $0x18] sm:$0xff]
      %vm393 = vcmask 261120
      %v395 = vsel %vm393, %v385, 0
      %v398 = vsel %vm393, %v386, 0
      %400 = vmatpush.msra.mxu0 0.0
      %401 = vmatpush.msra.mxu0 0.0
      %402 = vmatpush.msra.mxu0 0.0
      %403 = vmatpush.msra.mxu0 0.0
      %404 = vmatpush.msra.mxu0 0.0
      %405 = vmatpush.msra.mxu0 0.0
      %406 = vmatpush.msra.mxu0 0.0
      %407 = vmatpush.msra.mxu0 0.0
      %408 = vmatpush.msra.mxu0 0.0
      %409 = vmatpush.msra.mxu0 0.0
      %410 = vmatpush.msra.mxu0 0.0
      %411 = vmatpush.msra.mxu0 0.0
      %412 = vmatpush.msra.mxu0 %v392
      %413 = vmatpush.msra.mxu0 %v391
      %414 = vmatpush.msra.mxu0 %v390
      %415 = vmatpush.msra.mxu0 %v389
      %416 = vmatmul.f32.gmra.mxu0 %v395
      %v417 = vpop.f32.mrf.mxu0
      %v418 = vadd.f32 0.0, %v417
      %419 = vmatmul.f32.gmra.mxu0 %v398
      %v420 = vpop.f32.mrf.mxu0
      %v421 = vadd.f32 0.0, %v420
      %422 = vdwg.mxu0
      %v423 = vld [vmem:[%s3] sm:$0xff]
      %v424 = vld [vmem:[%s3 + $0x8] sm:$0xff]
      %v425 = vld [vmem:[%s3 + $0x10] sm:$0xff]
      %v426 = vld [vmem:[%s3 + $0x18] sm:$0xff]
      %427 = vmatpush.msra.mxu0 0.0
      %428 = vmatpush.msra.mxu0 0.0
      %429 = vmatpush.msra.mxu0 0.0
      %430 = vmatpush.msra.mxu0 0.0
      %431 = vmatpush.msra.mxu0 0.0
      %432 = vmatpush.msra.mxu0 0.0
      %433 = vmatpush.msra.mxu0 0.0
      %434 = vmatpush.msra.mxu0 0.0
      %435 = vmatpush.msra.mxu0 0.0
      %436 = vmatpush.msra.mxu0 0.0
      %437 = vmatpush.msra.mxu0 0.0
      %438 = vmatpush.msra.mxu0 0.0
      %439 = vmatpush.msra.mxu0 %v426
      %440 = vmatpush.msra.mxu0 %v425
      %441 = vmatpush.msra.mxu0 %v424
      %442 = vmatpush.msra.mxu0 %v423
      %443 = vmatmul.f32.gmra.mxu0 %v395
      %v444 = vpop.f32.mrf.mxu0
      %v445 = vadd.f32 0.0, %v444
      %446 = vmatmul.f32.gmra.mxu0 %v398
      %v447 = vpop.f32.mrf.mxu0
      %v448 = vadd.f32 0.0, %v447
      %449 = vdwg.mxu0
      %v450 = vld [vmem:[%s4] sm:$0xff]
      %v451 = vld [vmem:[%s4 + $0x8] sm:$0xff]
      %v452 = vld [vmem:[%s4 + $0x10] sm:$0xff]
      %v453 = vld [vmem:[%s4 + $0x18] sm:$0xff]
      %v454 = vld [vmem:[%s5] sm:$0x1]
      %v456 = vperm.slane %v454, 0
      %v459 = vsel %vm393, %v387, 0
      %v462 = vsel %vm393, %v388, 0
      %464 = vmatpush.msra.mxu0 0.0
      %465 = vmatpush.msra.mxu0 0.0
      %466 = vmatpush.msra.mxu0 0.0
      %467 = vmatpush.msra.mxu0 0.0
      %468 = vmatpush.msra.mxu0 0.0
      %469 = vmatpush.msra.mxu0 0.0
      %470 = vmatpush.msra.mxu0 0.0
      %471 = vmatpush.msra.mxu0 0.0
      %472 = vmatpush.msra.mxu0 0.0
      %473 = vmatpush.msra.mxu0 0.0
      %474 = vmatpush.msra.mxu0 0.0
      %475 = vmatpush.msra.mxu0 0.0
      %476 = vmatpush.msra.mxu0 %v453
      %477 = vmatpush.msra.mxu0 %v452
      %478 = vmatpush.msra.mxu0 %v451
      %479 = vmatpush.msra.mxu0 %v450
      %480 = vmatmul.f32.gmra.mxu0 %v459
      %v481 = vpop.f32.mrf.mxu0
      %v482 = vadd.f32 %v456, %v481
      %483 = vmatmul.f32.gmra.mxu0 %v462
      %v484 = vpop.f32.mrf.mxu0
      %v485 = vadd.f32 %v456, %v484
      %486 = vdwg.mxu0
      %v487 = vld [vmem:[%s6] sm:$0xff]
      %v488 = vld [vmem:[%s6 + $0x8] sm:$0xff]
      %v489 = vld [vmem:[%s6 + $0x10] sm:$0xff]
      %v490 = vld [vmem:[%s6 + $0x18] sm:$0xff]
      %v492 = vsel %vm393, %v482, 0
      %v495 = vsel %vm393, %v485, 0
      %497 = vmatpush.msra.mxu0 0.0
      %498 = vmatpush.msra.mxu0 0.0
      %499 = vmatpush.msra.mxu0 0.0
      %500 = vmatpush.msra.mxu0 0.0
      %501 = vmatpush.msra.mxu0 0.0
      %502 = vmatpush.msra.mxu0 0.0
      %503 = vmatpush.msra.mxu0 0.0
      %504 = vmatpush.msra.mxu0 0.0
      %505 = vmatpush.msra.mxu0 0.0
      %506 = vmatpush.msra.mxu0 0.0
      %507 = vmatpush.msra.mxu0 0.0
      %508 = vmatpush.msra.mxu0 0.0
      %509 = vmatpush.msra.mxu0 %v490
      %510 = vmatpush.msra.mxu0 %v489
      %511 = vmatpush.msra.mxu0 %v488
      %512 = vmatpush.msra.mxu0 %v487
      %513 = vmatmul.f32.gmra.mxu0 %v492
      %v514 = vpop.f32.mrf.mxu0
      %v515 = vadd.f32 0.0, %v514
      %516 = vmatmul.f32.gmra.mxu0 %v495
      %v517 = vpop.f32.mrf.mxu0
      %v518 = vadd.f32 0.0, %v517
      %519 = vdwg.mxu0
      %v520 = vld [vmem:[%s7] sm:$0xff]
      %vm521 = vcmask 64512
      %v523 = vsel %vm521, %v515, 0
      %v526 = vsel %vm521, %v518, 0
      %528 = vmatpush.msra.mxu0 0.0
      %529 = vmatpush.msra.mxu0 0.0
      %530 = vmatpush.msra.mxu0 0.0
      %531 = vmatpush.msra.mxu0 0.0
      %532 = vmatpush.msra.mxu0 0.0
      %533 = vmatpush.msra.mxu0 0.0
      %534 = vmatpush.msra.mxu0 0.0
      %535 = vmatpush.msra.mxu0 0.0
      %536 = vmatpush.msra.mxu0 0.0
      %537 = vmatpush.msra.mxu0 0.0
      %538 = vmatpush.msra.mxu0 0.0
      %539 = vmatpush.msra.mxu0 0.0
      %540 = vmatpush.msra.mxu0 0.0
      %541 = vmatpush.msra.mxu0 0.0
      %542 = vmatpush.msra.mxu0 0.0
      %543 = vmatpush.msra.mxu0 %v520
      %544 = vmatmul.f32.gmra.mxu0 %v523
      %v545 = vpop.f32.mrf.mxu0
      %v546 = vadd.f32 0.0, %v545
      %547 = vmatmul.f32.gmra.mxu0 %v526
      %v548 = vpop.f32.mrf.mxu0
      %v549 = vadd.f32 0.0, %v548
      %550 = vdwg.mxu0
      %v551 = vmul.f32 %v546, 0.125
      %v552 = vmul.f32 %v549, 0.125
      %v553 = vadd.f32 %v482, %v551
      %v554 = vadd.f32 %v485, %v552
      %v556 = vsel %vm521, %v418, 0
      %v559 = vsel %vm521, %v445, 0
      %561 = vmatpush.xpose.msra.mxu0 0.0
      %562 = vmatpush.xpose.msra.mxu0 0.0
      %563 = vmatpush.xpose.msra.mxu0 0.0
      %564 = vmatpush.xpose.msra.mxu0 0.0
      %565 = vmatpush.xpose.msra.mxu0 0.0
      %566 = vmatpush.xpose.msra.mxu0 0.0
      %567 = vmatpush.xpose.msra.mxu0 0.0
      %568 = vmatpush.xpose.msra.mxu0 0.0
      %569 = vmatpush.xpose.msra.mxu0 0.0
      %570 = vmatpush.xpose.msra.mxu0 0.0
      %571 = vmatpush.xpose.msra.mxu0 0.0
      %572 = vmatpush.xpose.msra.mxu0 0.0
      %573 = vmatpush.xpose.msra.mxu0 0.0
      %574 = vmatpush.xpose.msra.mxu0 0.0
      %575 = vmatpush.xpose.msra.mxu0 0.0
      %576 = vmatpush.xpose.msra.mxu0 %v559
      %577 = vmatmul.f32.gmra.mxu0 %v556
      %v578 = vpop.f32.mrf.mxu0
      %v579 = vadd.f32 0.0, %v578
      %580 = vdwg.mxu0
      %v582 = vsel %vm521, %v421, 0
      %v585 = vsel %vm521, %v448, 0
      %587 = vmatpush.xpose.msra.mxu0 0.0
      %588 = vmatpush.xpose.msra.mxu0 0.0
      %589 = vmatpush.xpose.msra.mxu0 0.0
      %590 = vmatpush.xpose.msra.mxu0 0.0
      %591 = vmatpush.xpose.msra.mxu0 0.0
      %592 = vmatpush.xpose.msra.mxu0 0.0
      %593 = vmatpush.xpose.msra.mxu0 0.0
      %594 = vmatpush.xpose.msra.mxu0 0.0
      %595 = vmatpush.xpose.msra.mxu0 0.0
      %596 = vmatpush.xpose.msra.mxu0 0.0
      %597 = vmatpush.xpose.msra.mxu0 0.0
      %598 = vmatpush.xpose.msra.mxu0 0.0
      %599 = vmatpush.xpose.msra.mxu0 0.0
      %600 = vmatpush.xpose.msra.mxu0 0.0
      %601 = vmatpush.xpose.msra.mxu0 0.0
      %602 = vmatpush.xpose.msra.mxu0 %v585
      %603 = vmatmul.f32.gmra.mxu0 %v582
      %v604 = vpop.f32.mrf.mxu0
      %v605 = vadd.f32 0.0, %v604
      %606 = vdwg.mxu0
      %v607 = vsel %vm521, %v579, -inf
      %608 = vmax.xlane.f32.xlu0 %v607
      %v609 = vpop.xlane.xlu0 %608
      %v610 = vsel %vm521, %v605, -inf
      %611 = vmax.xlane.f32.xlu0 %v610
      %v612 = vpop.xlane.xlu0 %611
      %v613 = vsub.f32 %v579, %v609
      %v614 = vsub.f32 %v605, %v612
      %v615 = vmul.f32 %v613, 1.442695
      %v616 = vpow.pop %v615
      %v617 = vmul.f32 %v614, 1.442695
      %v618 = vpow.pop %v617
      %v619 = vsel %vm521, %v616, 0.0
      %620 = vadd.xlane.f32.xlu0 %v619
      %v621 = vpop.xlane.xlu0 %620
      %v622 = vsel %vm521, %v618, 0.0
      %623 = vadd.xlane.f32.xlu0 %v622
      %v624 = vpop.xlane.xlu0 %623
      %v625 = vrcp.pop %v621
      %v626 = vrcp.pop %v624
      %v627 = vmul.f32 %v616, %v625
      %v628 = vmul.f32 %v618, %v626
      %v630 = vsel %vm521, %v627, 0
      %632 = vmatpush.msra.mxu0 0.0
      %633 = vmatpush.msra.mxu0 0.0
      %634 = vmatpush.msra.mxu0 0.0
      %635 = vmatpush.msra.mxu0 0.0
      %636 = vmatpush.msra.mxu0 0.0
      %637 = vmatpush.msra.mxu0 0.0
      %638 = vmatpush.msra.mxu0 0.0
      %639 = vmatpush.msra.mxu0 0.0
      %640 = vmatpush.msra.mxu0 0.0
      %641 = vmatpush.msra.mxu0 0.0
      %642 = vmatpush.msra.mxu0 0.0
      %643 = vmatpush.msra.mxu0 0.0
      %644 = vmatpush.msra.mxu0 0.0
      %645 = vmatpush.msra.mxu0 0.0
      %646 = vmatpush.msra.mxu0 0.0
      %647 = vmatpush.msra.mxu0 %v553
      %648 = vmatmul.f32.gmra.mxu0 %v630
      %v649 = vpop.f32.mrf.mxu0
      %v650 = vadd.f32 0.0, %v649
      %651 = vdwg.mxu0
      %v653 = vsel %vm521, %v628, 0
      %655 = vmatpush.msra.mxu0 0.0
      %656 = vmatpush.msra.mxu0 0.0
      %657 = vmatpush.msra.mxu0 0.0
      %658 = vmatpush.msra.mxu0 0.0
      %659 = vmatpush.msra.mxu0 0.0
      %660 = vmatpush.msra.mxu0 0.0
      %661 = vmatpush.msra.mxu0 0.0
      %662 = vmatpush.msra.mxu0 0.0
      %663 = vmatpush.msra.mxu0 0.0
      %664 = vmatpush.msra.mxu0 0.0
      %665 = vmatpush.msra.mxu0 0.0
      %666 = vmatpush.msra.mxu0 0.0
      %667 = vmatpush.msra.mxu0 0.0
      %668 = vmatpush.msra.mxu0 0.0
      %669 = vmatpush.msra.mxu0 0.0
      %670 = vmatpush.msra.mxu0 %v554
      %671 = vmatmul.f32.gmra.mxu0 %v653
      %v672 = vpop.f32.mrf.mxu0
      %v673 = vadd.f32 0.0, %v672
      %674 = vdwg.mxu0
      %675 = vst.msk [vmem:[#allocation2] sm:$0xff] %vm521, %v650
      %676 = vst.msk [vmem:[#allocation2 + $0x8] sm:$0xff] %vm521, %v673
      %677 = vrot.lane.b32.xlu0 %v418, 120
      %v678 = vpop.permute.xlu0 %677
      %679 = vrot.lane.b32.xlu0 %v445, 120
      %v680 = vpop.permute.xlu0 %679
      %v681 = vsel %vm521, %v678, 0
      %v683 = vsel %vm521, %v680, 0
      %685 = vmatpush.xpose.msra.mxu0 0.0
      %686 = vmatpush.xpose.msra.mxu0 0.0
      %687 = vmatpush.xpose.msra.mxu0 0.0
      %688 = vmatpush.xpose.msra.mxu0 0.0
      %689 = vmatpush.xpose.msra.mxu0 0.0
      %690 = vmatpush.xpose.msra.mxu0 0.0
      %691 = vmatpush.xpose.msra.mxu0 0.0
      %692 = vmatpush.xpose.msra.mxu0 0.0
      %693 = vmatpush.xpose.msra.mxu0 0.0
      %694 = vmatpush.xpose.msra.mxu0 0.0
      %695 = vmatpush.xpose.msra.mxu0 0.0
      %696 = vmatpush.xpose.msra.mxu0 0.0
      %697 = vmatpush.xpose.msra.mxu0 0.0
      %698 = vmatpush.xpose.msra.mxu0 0.0
      %699 = vmatpush.xpose.msra.mxu0 0.0
      %700 = vmatpush.xpose.msra.mxu0 %v683
      %701 = vmatmul.f32.gmra.mxu0 %v681
      %v702 = vpop.f32.mrf.mxu0
      %v703 = vadd.f32 0.0, %v702
      %704 = vdwg.mxu0
      %705 = vrot.lane.b32.xlu0 %v421, 120
      %v706 = vpop.permute.xlu0 %705
      %707 = vrot.lane.b32.xlu0 %v448, 120
      %v708 = vpop.permute.xlu0 %707
      %v709 = vsel %vm521, %v706, 0
      %v711 = vsel %vm521, %v708, 0
      %713 = vmatpush.xpose.msra.mxu0 0.0
      %714 = vmatpush.xpose.msra.mxu0 0.0
      %715 = vmatpush.xpose.msra.mxu0 0.0
      %716 = vmatpush.xpose.msra.mxu0 0.0
      %717 = vmatpush.xpose.msra.mxu0 0.0
      %718 = vmatpush.xpose.msra.mxu0 0.0
      %719 = vmatpush.xpose.msra.mxu0 0.0
      %720 = vmatpush.xpose.msra.mxu0 0.0
      %721 = vmatpush.xpose.msra.mxu0 0.0
      %722 = vmatpush.xpose.msra.mxu0 0.0
      %723 = vmatpush.xpose.msra.mxu0 0.0
      %724 = vmatpush.xpose.msra.mxu0 0.0
      %725 = vmatpush.xpose.msra.mxu0 0.0
      %726 = vmatpush.xpose.msra.mxu0 0.0
      %727 = vmatpush.xpose.msra.mxu0 0.0
      %728 = vmatpush.xpose.msra.mxu0 %v711
      %729 = vmatmul.f32.gmra.mxu0 %v709
      %v730 = vpop.f32.mrf.mxu0
      %v731 = vadd.f32 0.0, %v730
      %732 = vdwg.mxu0
      %v733 = vsel %vm521, %v703, -inf
      %734 = vmax.xlane.f32.xlu0 %v733
      %v735 = vpop.xlane.xlu0 %734
      %v736 = vsel %vm521, %v731, -inf
      %737 = vmax.xlane.f32.xlu0 %v736
      %v738 = vpop.xlane.xlu0 %737
      %v739 = vsub.f32 %v703, %v735
      %v740 = vsub.f32 %v731, %v738
      %v741 = vmul.f32 %v739, 1.442695
      %v742 = vpow.pop %v741
      %v743 = vmul.f32 %v740, 1.442695
      %v744 = vpow.pop %v743
      %v745 = vsel %vm521, %v742, 0.0
      %746 = vadd.xlane.f32.xlu0 %v745
      %v747 = vpop.xlane.xlu0 %746
      %v748 = vsel %vm521, %v744, 0.0
      %749 = vadd.xlane.f32.xlu0 %v748
      %v750 = vpop.xlane.xlu0 %749
      %v751 = vrcp.pop %v747
      %v752 = vrcp.pop %v750
      %v753 = vmul.f32 %v742, %v751
      %v754 = vmul.f32 %v744, %v752
      %756 = vrot.lane.b32.xlu0 %v553, 120
      %v757 = vpop.permute.xlu0 %756
      %v760 = vsel %vm521, %v753, 0
      %762 = vmatpush.msra.mxu0 0.0
      %763 = vmatpush.msra.mxu0 0.0
      %764 = vmatpush.msra.mxu0 0.0
      %765 = vmatpush.msra.mxu0 0.0
      %766 = vmatpush.msra.mxu0 0.0
      %767 = vmatpush.msra.mxu0 0.0
      %768 = vmatpush.msra.mxu0 0.0
      %769 = vmatpush.msra.mxu0 0.0
      %770 = vmatpush.msra.mxu0 0.0
      %771 = vmatpush.msra.mxu0 0.0
      %772 = vmatpush.msra.mxu0 0.0
      %773 = vmatpush.msra.mxu0 0.0
      %774 = vmatpush.msra.mxu0 0.0
      %775 = vmatpush.msra.mxu0 0.0
      %776 = vmatpush.msra.mxu0 0.0
      %777 = vmatpush.msra.mxu0 %v757
      %778 = vmatmul.f32.gmra.mxu0 %v760
      %v779 = vpop.f32.mrf.mxu0
      %v780 = vadd.f32 0.0, %v779
      %781 = vdwg.mxu0
      %783 = vrot.lane.b32.xlu0 %v554, 120
      %v784 = vpop.permute.xlu0 %783
      %v787 = vsel %vm521, %v754, 0
      %789 = vmatpush.msra.mxu0 0.0
      %790 = vmatpush.msra.mxu0 0.0
      %791 = vmatpush.msra.mxu0 0.0
      %792 = vmatpush.msra.mxu0 0.0
      %793 = vmatpush.msra.mxu0 0.0
      %794 = vmatpush.msra.mxu0 0.0
      %795 = vmatpush.msra.mxu0 0.0
      %796 = vmatpush.msra.mxu0 0.0
      %797 = vmatpush.msra.mxu0 0.0
      %798 = vmatpush.msra.mxu0 0.0
      %799 = vmatpush.msra.mxu0 0.0
      %800 = vmatpush.msra.mxu0 0.0
      %801 = vmatpush.msra.mxu0 0.0
      %802 = vmatpush.msra.mxu0 0.0
      %803 = vmatpush.msra.mxu0 0.0
      %804 = vmatpush.msra.mxu0 %v784
      %805 = vmatmul.f32.gmra.mxu0 %v787
      %v806 = vpop.f32.mrf.mxu0
      %v807 = vadd.f32 0.0, %v806
      %808 = vdwg.mxu0
      %811 = vrot.lane.b32.xlu0 %v780, 8
      %v812 = vpop.permute.xlu0 %811
      %813 = vrot.lane.b32.xlu0 %v807, 8
      %v814 = vpop.permute.xlu0 %813
      %vm817 = vcmask 130112
      %818 = vst.msk [vmem:[#allocation2] sm:$0xff] %vm817, %v812
      %819 = vst.msk [vmem:[#allocation2 + $0x8] sm:$0xff] %vm817, %v814
      %820 = vrot.lane.b32.xlu0 %v418, 112
      %v821 = vpop.permute.xlu0 %820
      %822 = vrot.lane.b32.xlu0 %v445, 112
      %v823 = vpop.permute.xlu0 %822
      %v824 = vsel %vm521, %v821, 0
      %v826 = vsel %vm521, %v823, 0
      %828 = vmatpush.xpose.msra.mxu0 0.0
      %829 = vmatpush.xpose.msra.mxu0 0.0
      %830 = vmatpush.xpose.msra.mxu0 0.0
      %831 = vmatpush.xpose.msra.mxu0 0.0
      %832 = vmatpush.xpose.msra.mxu0 0.0
      %833 = vmatpush.xpose.msra.mxu0 0.0
      %834 = vmatpush.xpose.msra.mxu0 0.0
      %835 = vmatpush.xpose.msra.mxu0 0.0
      %836 = vmatpush.xpose.msra.mxu0 0.0
      %837 = vmatpush.xpose.msra.mxu0 0.0
      %838 = vmatpush.xpose.msra.mxu0 0.0
      %839 = vmatpush.xpose.msra.mxu0 0.0
      %840 = vmatpush.xpose.msra.mxu0 0.0
      %841 = vmatpush.xpose.msra.mxu0 0.0
      %842 = vmatpush.xpose.msra.mxu0 0.0
      %843 = vmatpush.xpose.msra.mxu0 %v826
      %844 = vmatmul.f32.gmra.mxu0 %v824
      %v845 = vpop.f32.mrf.mxu0
      %v846 = vadd.f32 0.0, %v845
      %847 = vdwg.mxu0
      %848 = vrot.lane.b32.xlu0 %v421, 112
      %v849 = vpop.permute.xlu0 %848
      %850 = vrot.lane.b32.xlu0 %v448, 112
      %v851 = vpop.permute.xlu0 %850
      %v852 = vsel %vm521, %v849, 0
      %v854 = vsel %vm521, %v851, 0
      %856 = vmatpush.xpose.msra.mxu0 0.0
      %857 = vmatpush.xpose.msra.mxu0 0.0
      %858 = vmatpush.xpose.msra.mxu0 0.0
      %859 = vmatpush.xpose.msra.mxu0 0.0
      %860 = vmatpush.xpose.msra.mxu0 0.0
      %861 = vmatpush.xpose.msra.mxu0 0.0
      %862 = vmatpush.xpose.msra.mxu0 0.0
      %863 = vmatpush.xpose.msra.mxu0 0.0
      %864 = vmatpush.xpose.msra.mxu0 0.0
      %865 = vmatpush.xpose.msra.mxu0 0.0
      %866 = vmatpush.xpose.msra.mxu0 0.0
      %867 = vmatpush.xpose.msra.mxu0 0.0
      %868 = vmatpush.xpose.msra.mxu0 0.0
      %869 = vmatpush.xpose.msra.mxu0 0.0
      %870 = vmatpush.xpose.msra.mxu0 0.0
      %871 = vmatpush.xpose.msra.mxu0 %v854
      %872 = vmatmul.f32.gmra.mxu0 %v852
      %v873 = vpop.f32.mrf.mxu0
      %v874 = vadd.f32 0.0, %v873
      %875 = vdwg.mxu0
      %v876 = vsel %vm521, %v846, -inf
      %877 = vmax.xlane.f32.xlu0 %v876
      %v878 = vpop.xlane.xlu0 %877
      %v879 = vsel %vm521, %v874, -inf
      %880 = vmax.xlane.f32.xlu0 %v879
      %v881 = vpop.xlane.xlu0 %880
      %v882 = vsub.f32 %v846, %v878
      %v883 = vsub.f32 %v874, %v881
      %v884 = vmul.f32 %v882, 1.442695
      %v885 = vpow.pop %v884
      %v886 = vmul.f32 %v883, 1.442695
      %v887 = vpow.pop %v886
      %v888 = vsel %vm521, %v885, 0.0
      %889 = vadd.xlane.f32.xlu0 %v888
      %v890 = vpop.xlane.xlu0 %889
      %v891 = vsel %vm521, %v887, 0.0
      %892 = vadd.xlane.f32.xlu0 %v891
      %v893 = vpop.xlane.xlu0 %892
      %v894 = vrcp.pop %v890
      %v895 = vrcp.pop %v893
      %v896 = vmul.f32 %v885, %v894
      %v897 = vmul.f32 %v887, %v895
      %898 = vrot.lane.b32.xlu0 %v553, 112
      %v899 = vpop.permute.xlu0 %898
      %v902 = vsel %vm521, %v896, 0
      %904 = vmatpush.msra.mxu0 0.0
      %905 = vmatpush.msra.mxu0 0.0
      %906 = vmatpush.msra.mxu0 0.0
      %907 = vmatpush.msra.mxu0 0.0
      %908 = vmatpush.msra.mxu0 0.0
      %909 = vmatpush.msra.mxu0 0.0
      %910 = vmatpush.msra.mxu0 0.0
      %911 = vmatpush.msra.mxu0 0.0
      %912 = vmatpush.msra.mxu0 0.0
      %913 = vmatpush.msra.mxu0 0.0
      %914 = vmatpush.msra.mxu0 0.0
      %915 = vmatpush.msra.mxu0 0.0
      %916 = vmatpush.msra.mxu0 0.0
      %917 = vmatpush.msra.mxu0 0.0
      %918 = vmatpush.msra.mxu0 0.0
      %919 = vmatpush.msra.mxu0 %v899
      %920 = vmatmul.f32.gmra.mxu0 %v902
      %v921 = vpop.f32.mrf.mxu0
      %v922 = vadd.f32 0.0, %v921
      %923 = vdwg.mxu0
      %924 = vrot.lane.b32.xlu0 %v554, 112
      %v925 = vpop.permute.xlu0 %924
      %v928 = vsel %vm521, %v897, 0
      %930 = vmatpush.msra.mxu0 0.0
      %931 = vmatpush.msra.mxu0 0.0
      %932 = vmatpush.msra.mxu0 0.0
      %933 = vmatpush.msra.mxu0 0.0
      %934 = vmatpush.msra.mxu0 0.0
      %935 = vmatpush.msra.mxu0 0.0
      %936 = vmatpush.msra.mxu0 0.0
      %937 = vmatpush.msra.mxu0 0.0
      %938 = vmatpush.msra.mxu0 0.0
      %939 = vmatpush.msra.mxu0 0.0
      %940 = vmatpush.msra.mxu0 0.0
      %941 = vmatpush.msra.mxu0 0.0
      %942 = vmatpush.msra.mxu0 0.0
      %943 = vmatpush.msra.mxu0 0.0
      %944 = vmatpush.msra.mxu0 0.0
      %945 = vmatpush.msra.mxu0 %v925
      %946 = vmatmul.f32.gmra.mxu0 %v928
      %v947 = vpop.f32.mrf.mxu0
      %v948 = vadd.f32 0.0, %v947
      %949 = vdwg.mxu0
      %952 = vrot.lane.b32.xlu0 %v922, 16
      %v953 = vpop.permute.xlu0 %952
      %954 = vrot.lane.b32.xlu0 %v948, 16
      %v955 = vpop.permute.xlu0 %954
      %vm958 = vcmask 195712
      %959 = vst.msk [vmem:[#allocation2] sm:$0xff] %vm958, %v953
      %960 = vst.msk [vmem:[#allocation2 + $0x8] sm:$0xff] %vm958, %v955
      %961 = vrot.lane.b32.xlu0 %v418, 104
      %v962 = vpop.permute.xlu0 %961
      %963 = vrot.lane.b32.xlu0 %v445, 104
      %v964 = vpop.permute.xlu0 %963
      %v965 = vsel %vm521, %v962, 0
      %v967 = vsel %vm521, %v964, 0
      %969 = vmatpush.xpose.msra.mxu0 0.0
      %970 = vmatpush.xpose.msra.mxu0 0.0
      %971 = vmatpush.xpose.msra.mxu0 0.0
      %972 = vmatpush.xpose.msra.mxu0 0.0
      %973 = vmatpush.xpose.msra.mxu0 0.0
      %974 = vmatpush.xpose.msra.mxu0 0.0
      %975 = vmatpush.xpose.msra.mxu0 0.0
      %976 = vmatpush.xpose.msra.mxu0 0.0
      %977 = vmatpush.xpose.msra.mxu0 0.0
      %978 = vmatpush.xpose.msra.mxu0 0.0
      %979 = vmatpush.xpose.msra.mxu0 0.0
      %980 = vmatpush.xpose.msra.mxu0 0.0
      %981 = vmatpush.xpose.msra.mxu0 0.0
      %982 = vmatpush.xpose.msra.mxu0 0.0
      %983 = vmatpush.xpose.msra.mxu0 0.0
      %984 = vmatpush.xpose.msra.mxu0 %v967
      %985 = vmatmul.f32.gmra.mxu0 %v965
      %v986 = vpop.f32.mrf.mxu0
      %v987 = vadd.f32 0.0, %v986
      %988 = vdwg.mxu0
      %989 = vrot.lane.b32.xlu0 %v421, 104
      %v990 = vpop.permute.xlu0 %989
      %991 = vrot.lane.b32.xlu0 %v448, 104
      %v992 = vpop.permute.xlu0 %991
      %v993 = vsel %vm521, %v990, 0
      %v995 = vsel %vm521, %v992, 0
      %997 = vmatpush.xpose.msra.mxu0 0.0
      %998 = vmatpush.xpose.msra.mxu0 0.0
      %999 = vmatpush.xpose.msra.mxu0 0.0
      %1000 = vmatpush.xpose.msra.mxu0 0.0
      %1001 = vmatpush.xpose.msra.mxu0 0.0
      %1002 = vmatpush.xpose.msra.mxu0 0.0
      %1003 = vmatpush.xpose.msra.mxu0 0.0
      %1004 = vmatpush.xpose.msra.mxu0 0.0
      %1005 = vmatpush.xpose.msra.mxu0 0.0
      %1006 = vmatpush.xpose.msra.mxu0 0.0
      %1007 = vmatpush.xpose.msra.mxu0 0.0
      %1008 = vmatpush.xpose.msra.mxu0 0.0
      %1009 = vmatpush.xpose.msra.mxu0 0.0
      %1010 = vmatpush.xpose.msra.mxu0 0.0
      %1011 = vmatpush.xpose.msra.mxu0 0.0
      %1012 = vmatpush.xpose.msra.mxu0 %v995
      %1013 = vmatmul.f32.gmra.mxu0 %v993
      %v1014 = vpop.f32.mrf.mxu0
      %v1015 = vadd.f32 0.0, %v1014
      %1016 = vdwg.mxu0
      %v1017 = vsel %vm521, %v987, -inf
      %1018 = vmax.xlane.f32.xlu0 %v1017
      %v1019 = vpop.xlane.xlu0 %1018
      %v1020 = vsel %vm521, %v1015, -inf
      %1021 = vmax.xlane.f32.xlu0 %v1020
      %v1022 = vpop.xlane.xlu0 %1021
      %v1023 = vsub.f32 %v987, %v1019
      %v1024 = vsub.f32 %v1015, %v1022
      %v1025 = vmul.f32 %v1023, 1.442695
      %v1026 = vpow.pop %v1025
      %v1027 = vmul.f32 %v1024, 1.442695
      %v1028 = vpow.pop %v1027
      %v1029 = vsel %vm521, %v1026, 0.0
      %1030 = vadd.xlane.f32.xlu0 %v1029
      %v1031 = vpop.xlane.xlu0 %1030
      %v1032 = vsel %vm521, %v1028, 0.0
      %1033 = vadd.xlane.f32.xlu0 %v1032
      %v1034 = vpop.xlane.xlu0 %1033
      %v1035 = vrcp.pop %v1031
      %v1036 = vrcp.pop %v1034
      %v1037 = vmul.f32 %v1026, %v1035
      %v1038 = vmul.f32 %v1028, %v1036
      %1039 = vrot.lane.b32.xlu0 %v553, 104
      %v1040 = vpop.permute.xlu0 %1039
      %v1043 = vsel %vm521, %v1037, 0
      %1045 = vmatpush.msra.mxu0 0.0
      %1046 = vmatpush.msra.mxu0 0.0
      %1047 = vmatpush.msra.mxu0 0.0
      %1048 = vmatpush.msra.mxu0 0.0
      %1049 = vmatpush.msra.mxu0 0.0
      %1050 = vmatpush.msra.mxu0 0.0
      %1051 = vmatpush.msra.mxu0 0.0
      %1052 = vmatpush.msra.mxu0 0.0
      %1053 = vmatpush.msra.mxu0 0.0
      %1054 = vmatpush.msra.mxu0 0.0
      %1055 = vmatpush.msra.mxu0 0.0
      %1056 = vmatpush.msra.mxu0 0.0
      %1057 = vmatpush.msra.mxu0 0.0
      %1058 = vmatpush.msra.mxu0 0.0
      %1059 = vmatpush.msra.mxu0 0.0
      %1060 = vmatpush.msra.mxu0 %v1040
      %1061 = vmatmul.f32.gmra.mxu0 %v1043
      %v1062 = vpop.f32.mrf.mxu0
      %v1063 = vadd.f32 0.0, %v1062
      %1064 = vdwg.mxu0
      %1065 = vrot.lane.b32.xlu0 %v554, 104
      %v1066 = vpop.permute.xlu0 %1065
      %v1069 = vsel %vm521, %v1038, 0
      %1071 = vmatpush.msra.mxu0 0.0
      %1072 = vmatpush.msra.mxu0 0.0
      %1073 = vmatpush.msra.mxu0 0.0
      %1074 = vmatpush.msra.mxu0 0.0
      %1075 = vmatpush.msra.mxu0 0.0
      %1076 = vmatpush.msra.mxu0 0.0
      %1077 = vmatpush.msra.mxu0 0.0
      %1078 = vmatpush.msra.mxu0 0.0
      %1079 = vmatpush.msra.mxu0 0.0
      %1080 = vmatpush.msra.mxu0 0.0
      %1081 = vmatpush.msra.mxu0 0.0
      %1082 = vmatpush.msra.mxu0 0.0
      %1083 = vmatpush.msra.mxu0 0.0
      %1084 = vmatpush.msra.mxu0 0.0
      %1085 = vmatpush.msra.mxu0 0.0
      %1086 = vmatpush.msra.mxu0 %v1066
      %1087 = vmatmul.f32.gmra.mxu0 %v1069
      %v1088 = vpop.f32.mrf.mxu0
      %v1089 = vadd.f32 0.0, %v1088
      %1090 = vdwg.mxu0
      %1093 = vrot.lane.b32.xlu0 %v1063, 24
      %v1094 = vpop.permute.xlu0 %1093
      %1095 = vrot.lane.b32.xlu0 %v1089, 24
      %v1096 = vpop.permute.xlu0 %1095
      %vm1099 = vcmask 261312
      %1100 = vst.msk [vmem:[#allocation2] sm:$0xff] %vm1099, %v1094
      %1101 = vst.msk [vmem:[#allocation2 + $0x8] sm:$0xff] %vm1099, %v1096
      %v1102 = vld [vmem:[#allocation2] sm:$0xff]
      %v1103 = vld [vmem:[#allocation2 + $0x8] sm:$0xff]
      %v1104 = vld [vmem:[%s8] sm:$0xff]
      %v1105 = vld [vmem:[%s8 + $0x8] sm:$0xff]
      %v1106 = vld [vmem:[%s8 + $0x10] sm:$0xff]
      %v1107 = vld [vmem:[%s8 + $0x18] sm:$0xff]
      %v1108 = vld [vmem:[%s9] sm:$0x1]
      %v1110 = vperm.slane %v1108, 0
      %v1113 = vsel %vm393, %v1102, 0
      %v1116 = vsel %vm393, %v1103, 0
      %1118 = vmatpush.msra.mxu0 0.0
      %1119 = vmatpush.msra.mxu0 0.0
      %1120 = vmatpush.msra.mxu0 0.0
      %1121 = vmatpush.msra.mxu0 0.0
      %1122 = vmatpush.msra.mxu0 0.0
      %1123 = vmatpush.msra.mxu0 0.0
      %1124 = vmatpush.msra.mxu0 0.0
      %1125 = vmatpush.msra.mxu0 0.0
      %1126 = vmatpush.msra.mxu0 0.0
      %1127 = vmatpush.msra.mxu0 0.0
      %1128 = vmatpush.msra.mxu0 0.0
      %1129 = vmatpush.msra.mxu0 0.0
      %1130 = vmatpush.msra.mxu0 %v1107
      %1131 = vmatpush.msra.mxu0 %v1106
      %1132 = vmatpush.msra.mxu0 %v1105
      %1133 = vmatpush.msra.mxu0 %v1104
      %1134 = vmatmul.f32.gmra.mxu0 %v1113
      %v1135 = vpop.f32.mrf.mxu0
      %v1136 = vadd.f32 %v1110, %v1135
      %1137 = vmatmul.f32.gmra.mxu0 %v1116
      %v1138 = vpop.f32.mrf.mxu0
      %v1139 = vadd.f32 %v1110, %v1138
      %1140 = vdwg.mxu0
      %1141 = vst.msk [vmem:[%s383] sm:$0xff] %vm393, %v1136
      %1142 = vst.msk [vmem:[%s383 + $0x8] sm:$0xff] %vm393, %v1139
      %s1143 = smul.u32 2, %s21
      %p1144 = scmp.lt.s32.totalorder %s1143, 7
      %s1145 = scalar_select %p1144, %s1143, 7
      %s1146 = smul.addr %s1145, 8
      %s1147 = scalar_lea.vmem %s10, %s1146
      // Predicated region
      $region61: #{tpu_custom_call.1} parent=59 // pred_check
        %p1148 = pneg %p259
      $region62: #{tpu_custom_call.1} parent=59 // pred_check_branch
        %1150 = sbr.rel (%p1148) target = $region64
      $region63: #{tpu_custom_call.1} parent=59 // pred_region
        %s1151 = smul.u32 2, %s21
      $region64: #{tpu_custom_call.1} parent=59 // pred_fallthru
        _
    $region60: #{tpu_custom_call.1} parent=5 // pred_fallthru
      _
    %p1152 = scmp.le.s32.totalorder 2, %s16
    // Predicated region
    $region65: #{tpu_custom_call.1} parent=5 // pred_check
      %p1153 = pneg %p1152
    $region66: #{tpu_custom_call.1} parent=5 // pred_check_branch
      %1155 = sbr.rel (%p1153) target = $region68
    $region67: #{tpu_custom_call.1} parent=5 // pred_region
      %s1156 = ssub.s32 %s16, 2
      // Predicated region
      $region69: #{tpu_custom_call.1} parent=67 // pred_check
        %p1157 = pneg %p265
      $region70: #{tpu_custom_call.1} parent=67 // pred_check_branch
        %1159 = sbr.rel (%p1157) target = $region72
      $region71: #{tpu_custom_call.1} parent=67 // pred_region
        %s1160 = smul.u32 2, %s22
        %p1161 = scmp.lt.s32.totalorder %s1160, 7
        %s1162 = scalar_select %p1161, %s1160, 7
        %s1163 = smul.addr %s1162, 8
        %s1164 = scalar_lea.vmem %s10, %s1163
      $region72: #{tpu_custom_call.1} parent=67 // pred_fallthru
        _
    $region68: #{tpu_custom_call.1} parent=5 // pred_fallthru
      _
  $region6: #{tpu_custom_call.1} parent=0 // loop_footer
    %s20 = sadd.s32 1, %s16
  $region7: #{tpu_custom_call.1} parent=0 // loop_footer_branch
    %15 = sbr.rel target = $region3
  $region8: #{tpu_custom_call.1} parent=0 // loop_exit
    _

</llo_original>
